<compile_context>
chip_gen: v7x
topology: tpu7x:2x2x1
jax: 0.10.0
libtpu: 0.0.40
codegen_flags: <defaults>
</compile_context>

<pallas_src>
import functools

import jax
import jax.numpy as jnp
from jax.experimental import pallas as pl
from jax.experimental.pallas import tpu as pltpu


def lstm_kernel(x_ref, wih_ref, whh_ref, b_ref, wfc_ref, bfc_ref,
                logits_ref, h_ref, c_ref, gx_ref, *, seq_len, batch):
    """Single-invocation LSTM forward.

    x_ref:      (T*B, E)  bf16  embedded inputs, time-major row order (t, b)
    wih_ref:    (E, 4H)   bf16  W_ih^T
    whh_ref:    (H, 4H)   bf16  W_hh^T
    b_ref:      (1, 4H)   f32   b_ih + b_hh
    wfc_ref:    (H, V)    bf16  W_fc^T
    bfc_ref:    (1, V)    f32   b_fc
    logits_ref: (B, V)    f32   fc(h_T)
    h_ref:      (B, H)    f32   final hidden state h_n
    c_ref:      (B, H)    f32   final cell state   c_n
    gx_ref:     (T*B, 4H) f32   scratch: hoisted input projection
    """
    hidden = h_ref.shape[-1]

    # ---- Prologue: input projection for ALL timesteps in one MXU matmul ----
    # (bf16 operands, f32 accumulation) instead of T tiny M=B matmuls.
    gx_ref[...] = (
        jnp.dot(x_ref[...], wih_ref[...], preferred_element_type=jnp.float32)
        + b_ref[...])

    # ---- Serial recurrence over time; h/c carried in vregs (f32) ----
    def step(t, carry):
        h_prev, c_prev = carry
        gates = (gx_ref[pl.ds(t * batch, batch), :]
                 + jnp.dot(h_prev.astype(whh_ref.dtype), whh_ref[...],
                           preferred_element_type=jnp.float32))
        # PyTorch gate order: i, f, g, o  (H=128 keeps these slices lane-aligned).
        i_g = jax.nn.sigmoid(gates[:, 0 * hidden:1 * hidden])
        f_g = jax.nn.sigmoid(gates[:, 1 * hidden:2 * hidden])
        g_g = jnp.tanh(gates[:, 2 * hidden:3 * hidden])
        o_g = jax.nn.sigmoid(gates[:, 3 * hidden:4 * hidden])
        c_new = f_g * c_prev + i_g * g_g
        h_new = o_g * jnp.tanh(c_new)
        return (h_new, c_new)

    h0 = jnp.zeros((batch, hidden), jnp.float32)
    c0 = jnp.zeros((batch, hidden), jnp.float32)
    h_fin, c_fin = jax.lax.fori_loop(0, seq_len, step, (h0, c0), unroll=True)

    h_ref[...] = h_fin
    c_ref[...] = c_fin

    # ---- Final projection on the last timestep only ----
    # TODO(synk): at realistic vocab sizes, split this fc into its own lane-tiled
    # pallas_call so W_fc^T is not VMEM-resident during the recurrence (v7x: 64 MiB VMEM).
    logits_ref[...] = (
        jnp.dot(h_fin.astype(wfc_ref.dtype), wfc_ref[...],
                preferred_element_type=jnp.float32)
        + bfc_ref[...])


@jax.jit
def lstm_model_forward(tokens, params):
    """tokens: (B, T) int32. Returns (logits (B, V), (h_n (1,B,H), c_n (1,B,H)))."""
    B, T = tokens.shape
    H = params["w_hh_t"].shape[0]
    V = params["w_fc_t"].shape[1]

    # Embedding lookup (XLA gather), produced directly in time-major (t, b) row
    # order -> no separate transpose of the activations before the kernel.
    flat_ids = jnp.reshape(jnp.transpose(tokens), (-1,))                 # (T*B,)
    x = jnp.take(params["embedding"], flat_ids, axis=0).astype(jnp.bfloat16)

    w_ih = params["w_ih_t"].astype(jnp.bfloat16)
    w_hh = params["w_hh_t"].astype(jnp.bfloat16)
    w_fc = params["w_fc_t"].astype(jnp.bfloat16)
    b_gate = (params["b_ih"] + params["b_hh"]).reshape(1, 4 * H)
    b_fc = params["b_fc"].reshape(1, V)

    logits, h_n, c_n = pl.pallas_call(
        functools.partial(lstm_kernel, seq_len=T, batch=B),
        out_shape=(
            jax.ShapeDtypeStruct((B, V), jnp.float32),
            jax.ShapeDtypeStruct((B, H), jnp.float32),
            jax.ShapeDtypeStruct((B, H), jnp.float32),
        ),
        # No grid: single invocation, whole arrays in VMEM, no double-buffering.
        scratch_shapes=[pltpu.VMEM((T * B, 4 * H), jnp.float32)],
    )(x, w_ih, w_hh, b_gate, w_fc, b_fc)

    # PyTorch nn.LSTM hidden: (h_n, c_n) each of shape (num_layers, B, H).
    return logits, (h_n[None, ...], c_n[None, ...])


def reference_forward_matched(tokens, params):
    """Pure-JAX reference with the SAME precision scheme as the kernel
    (bf16 matmul operands, f32 accumulation, f32 state)."""
    B, T = tokens.shape
    H = params["w_hh_t"].shape[0]
    emb = jnp.take(params["embedding"], tokens, axis=0).astype(jnp.bfloat16)  # (B,T,E)
    w_ih = params["w_ih_t"].astype(jnp.bfloat16)
    w_hh = params["w_hh_t"].astype(jnp.bfloat16)
    w_fc = params["w_fc_t"].astype(jnp.bfloat16)
    b = params["b_ih"] + params["b_hh"]

    def step(carry, x_t):
        h, c = carry
        gates = (jnp.dot(x_t, w_ih, preferred_element_type=jnp.float32) + b
                 + jnp.dot(h.astype(jnp.bfloat16), w_hh,
                           preferred_element_type=jnp.float32))
        i = jax.nn.sigmoid(gates[:, 0 * H:1 * H])
        f = jax.nn.sigmoid(gates[:, 1 * H:2 * H])
        g = jnp.tanh(gates[:, 2 * H:3 * H])
        o = jax.nn.sigmoid(gates[:, 3 * H:4 * H])
        c_new = f * c + i * g
        h_new = o * jnp.tanh(c_new)
        return (h_new, c_new), None

    init = (jnp.zeros((B, H), jnp.float32), jnp.zeros((B, H), jnp.float32))
    (h_n, c_n), _ = jax.lax.scan(step, init, jnp.transpose(emb, (1, 0, 2)))
    logits = (jnp.dot(h_n.astype(jnp.bfloat16), w_fc,
                      preferred_element_type=jnp.float32) + params["b_fc"])
    return logits, (h_n[None], c_n[None])


def reference_forward_f32(tokens, params):
    """Pure-JAX full-f32 reference matching PyTorch LSTM semantics."""
    emb = jnp.take(params["embedding"], tokens, axis=0)   # (B, T, E)
    B, T, E = emb.shape
    H = params["w_hh_t"].shape[0]

    def step(carry, x_t):
        h, c = carry
        gates = (x_t @ params["w_ih_t"] + h @ params["w_hh_t"]
                 + params["b_ih"] + params["b_hh"])
        i = jax.nn.sigmoid(gates[:, 0 * H:1 * H])
        f = jax.nn.sigmoid(gates[:, 1 * H:2 * H])
        g = jnp.tanh(gates[:, 2 * H:3 * H])
        o = jax.nn.sigmoid(gates[:, 3 * H:4 * H])
        c_new = f * c + i * g
        h_new = o * jnp.tanh(c_new)
        return (h_new, c_new), None

    init = (jnp.zeros((B, H), jnp.float32), jnp.zeros((B, H), jnp.float32))
    (h_n, c_n), _ = jax.lax.scan(step, init, jnp.transpose(emb, (1, 0, 2)))
    logits = h_n @ params["w_fc_t"] + params["b_fc"]
    return logits, (h_n[None], c_n[None])


def init_params(key, vocab_size, embed_dim, hidden_size):
    ks = jax.random.split(key, 7)
    stdv = 1.0 / jnp.sqrt(hidden_size)
    u = lambda k, shape: jax.random.uniform(k, shape, jnp.float32, -stdv, stdv)
    return {
        # nn.Embedding: N(0, 1)
        "embedding": jax.random.normal(ks[0], (vocab_size, embed_dim), jnp.float32),
        # nn.LSTM weights stored pre-transposed: W_ih^T (E,4H), W_hh^T (H,4H)
        "w_ih_t": u(ks[1], (embed_dim, 4 * hidden_size)),
        "w_hh_t": u(ks[2], (hidden_size, 4 * hidden_size)),
        "b_ih": u(ks[3], (4 * hidden_size,)),
        "b_hh": u(ks[4], (4 * hidden_size,)),
        # nn.Linear stored pre-transposed: W_fc^T (H, V)
        "w_fc_t": u(ks[5], (hidden_size, vocab_size)),
        "b_fc": u(ks[6], (vocab_size,)),
    }


if __name__ == "__main__":
    VOCAB, EMBED, HIDDEN = 256, 64, 128
    B, T = 2, 8

    key = jax.random.PRNGKey(0)
    k_param, k_tok = jax.random.split(key)
    params = init_params(k_param, VOCAB, EMBED, HIDDEN)
    tokens = jax.random.randint(k_tok, (B, T), 0, VOCAB, dtype=jnp.int32)

    logits, (h_n, c_n) = lstm_model_forward(tokens, params)
    jax.block_until_ready((logits, h_n, c_n))

    assert logits.shape == (B, VOCAB)
    assert h_n.shape == (1, B, HIDDEN) and c_n.shape == (1, B, HIDDEN)

    # Primary check: matched-precision pure-JAX reference (bf16 matmuls, f32 acc).
    m_logits, (m_h, m_c) = reference_forward_matched(tokens, params)
    assert jnp.allclose(logits, m_logits, atol=1e-3, rtol=1e-3)
    assert jnp.allclose(h_n, m_h, atol=1e-3, rtol=1e-3)
    assert jnp.allclose(c_n, m_c, atol=1e-3, rtol=1e-3)

    # Sanity check vs. full-f32 PyTorch-semantics reference (loose tolerance
    # because the kernel uses bf16 matmul operands by design).
    f_logits, (f_h, f_c) = reference_forward_f32(tokens, params)
    assert jnp.allclose(logits, f_logits, atol=5e-2, rtol=5e-2)
    assert jnp.allclose(h_n, f_h, atol=5e-2, rtol=5e-2)
    assert jnp.allclose(c_n, f_c, atol=5e-2, rtol=5e-2)

    print("KERNEL_OK")
</pallas_src>

<mosaic_0001>
module attributes {stable_mosaic.version = 11 : i64} {
  func.func @lstm_kernel(%arg0: memref<16x64xbf16, #tpu.memory_space<vmem>>, %arg1: memref<64x512xbf16, #tpu.memory_space<vmem>>, %arg2: memref<128x512xbf16, #tpu.memory_space<vmem>>, %arg3: memref<1x512xf32, #tpu.memory_space<vmem>>, %arg4: memref<128x256xbf16, #tpu.memory_space<vmem>>, %arg5: memref<1x256xf32, #tpu.memory_space<vmem>>, %arg6: memref<2x256xf32, #tpu.memory_space<vmem>>, %arg7: memref<2x128xf32, #tpu.memory_space<vmem>>, %arg8: memref<2x128xf32, #tpu.memory_space<vmem>>, %arg9: memref<16x512xf32, #tpu.memory_space<vmem>>) attributes {dimension_semantics = [], scalar_prefetch = 0 : i64, scratch_operands = 1 : i64, tpu.core_type = #tpu.core_type<tc>} {
    %c0 = arith.constant 0 : index
    %c0_0 = arith.constant 0 : index
    %0 = vector.load %arg0[%c0, %c0_0] : memref<16x64xbf16, #tpu.memory_space<vmem>>, vector<16x64xbf16>
    %c0_1 = arith.constant 0 : index
    %c0_2 = arith.constant 0 : index
    %1 = vector.load %arg1[%c0_1, %c0_2] : memref<64x512xbf16, #tpu.memory_space<vmem>>, vector<64x512xbf16>
    %cst = arith.constant dense<0.000000e+00> : vector<16x512xf32>
    %2 = tpu.matmul %0, %1, %cst {dimension_numbers = #tpu.dot_dimension_numbers<[1], [0], [0], [1], [0, 0, 1, 1], [], []>} : vector<16x64xbf16>, vector<64x512xbf16>, vector<16x512xf32> -> vector<16x512xf32>
    %c0_3 = arith.constant 0 : index
    %c0_4 = arith.constant 0 : index
    %3 = vector.load %arg3[%c0_3, %c0_4] : memref<1x512xf32, #tpu.memory_space<vmem>>, vector<1x512xf32>
    %4 = vector.broadcast %3 : vector<1x512xf32> to vector<16x512xf32>
    %5 = arith.addf %2, %4 : vector<16x512xf32>
    %c0_5 = arith.constant 0 : index
    %c0_6 = arith.constant 0 : index
    %6 = vector.load %arg9[%c0_5, %c0_6] : memref<16x512xf32, #tpu.memory_space<vmem>>, vector<16x512xf32>
    tpu.vector_store %arg9[%c0_5, %c0_6], %5 {strides = array<i32>} : memref<16x512xf32, #tpu.memory_space<vmem>>, vector<16x512xf32>,
    %cst_7 = arith.constant 0.000000e+00 : f32
    %7 = vector.broadcast %cst_7 : f32 to vector<2x128xf32>
    %cst_8 = arith.constant 0.000000e+00 : f32
    %8 = vector.broadcast %cst_8 : f32 to vector<2x128xf32>
    %c0_i32 = arith.constant 0 : i32
    %c2_i32 = arith.constant 2 : i32
    %9 = arith.muli %c0_i32, %c2_i32 : i32
    %10 = arith.index_cast %9 : i32 to index
    %c0_9 = arith.constant 0 : index
    %11 = vector.load %arg9[%10, %c0_9] : memref<16x512xf32, #tpu.memory_space<vmem>>, vector<2x512xf32>
    %12 = arith.truncf %7 : vector<2x128xf32> to vector<2x128xbf16>
    %c0_10 = arith.constant 0 : index
    %c0_11 = arith.constant 0 : index
    %13 = vector.load %arg2[%c0_10, %c0_11] : memref<128x512xbf16, #tpu.memory_space<vmem>>, vector<128x512xbf16>
    %cst_12 = arith.constant dense<0.000000e+00> : vector<2x512xf32>
    %14 = tpu.matmul %12, %13, %cst_12 {dimension_numbers = #tpu.dot_dimension_numbers<[1], [0], [0], [1], [0, 0, 1, 1], [], []>} : vector<2x128xbf16>, vector<128x512xbf16>, vector<2x512xf32> -> vector<2x512xf32>
    %15 = arith.addf %11, %14 : vector<2x512xf32>
    %16 = vector.extract_strided_slice %15 {offsets = [0, 0], sizes = [2, 128], strides = [1, 1]} : vector<2x512xf32> to vector<2x128xf32>
    %17 = arith.negf %16 : vector<2x128xf32>
    %18 = math.exp %17 : vector<2x128xf32>
    %cst_13 = arith.constant 1.000000e+00 : f32
    %19 = vector.broadcast %cst_13 : f32 to vector<2x128xf32>
    %20 = arith.addf %19, %18 : vector<2x128xf32>
    %21 = arith.divf %19, %20 : vector<2x128xf32>
    %22 = vector.extract_strided_slice %15 {offsets = [0, 128], sizes = [2, 128], strides = [1, 1]} : vector<2x512xf32> to vector<2x128xf32>
    %23 = arith.negf %22 : vector<2x128xf32>
    %24 = math.exp %23 : vector<2x128xf32>
    %cst_14 = arith.constant 1.000000e+00 : f32
    %25 = vector.broadcast %cst_14 : f32 to vector<2x128xf32>
    %26 = arith.addf %25, %24 : vector<2x128xf32>
    %27 = arith.divf %25, %26 : vector<2x128xf32>
    %28 = vector.extract_strided_slice %15 {offsets = [0, 256], sizes = [2, 128], strides = [1, 1]} : vector<2x512xf32> to vector<2x128xf32>
    %29 = math.tanh %28 : vector<2x128xf32>
    %30 = vector.extract_strided_slice %15 {offsets = [0, 384], sizes = [2, 128], strides = [1, 1]} : vector<2x512xf32> to vector<2x128xf32>
    %31 = arith.negf %30 : vector<2x128xf32>
    %32 = math.exp %31 : vector<2x128xf32>
    %cst_15 = arith.constant 1.000000e+00 : f32
    %33 = vector.broadcast %cst_15 : f32 to vector<2x128xf32>
    %34 = arith.addf %33, %32 : vector<2x128xf32>
    %35 = arith.divf %33, %34 : vector<2x128xf32>
    %36 = arith.mulf %27, %8 : vector<2x128xf32>
    %37 = arith.mulf %21, %29 : vector<2x128xf32>
    %38 = arith.addf %36, %37 : vector<2x128xf32>
    %39 = math.tanh %38 : vector<2x128xf32>
    %40 = arith.mulf %35, %39 : vector<2x128xf32>
    %c1_i32 = arith.constant 1 : i32
    %c2_i32_16 = arith.constant 2 : i32
    %41 = arith.muli %c1_i32, %c2_i32_16 : i32
    %42 = arith.index_cast %41 : i32 to index
    %c0_17 = arith.constant 0 : index
    %43 = vector.load %arg9[%42, %c0_17] : memref<16x512xf32, #tpu.memory_space<vmem>>, vector<2x512xf32>
    %44 = arith.truncf %40 : vector<2x128xf32> to vector<2x128xbf16>
    %c0_18 = arith.constant 0 : index
    %c0_19 = arith.constant 0 : index
    %45 = vector.load %arg2[%c0_18, %c0_19] : memref<128x512xbf16, #tpu.memory_space<vmem>>, vector<128x512xbf16>
    %cst_20 = arith.constant dense<0.000000e+00> : vector<2x512xf32>
    %46 = tpu.matmul %44, %45, %cst_20 {dimension_numbers = #tpu.dot_dimension_numbers<[1], [0], [0], [1], [0, 0, 1, 1], [], []>} : vector<2x128xbf16>, vector<128x512xbf16>, vector<2x512xf32> -> vector<2x512xf32>
    %47 = arith.addf %43, %46 : vector<2x512xf32>
    %48 = vector.extract_strided_slice %47 {offsets = [0, 0], sizes = [2, 128], strides = [1, 1]} : vector<2x512xf32> to vector<2x128xf32>
    %49 = arith.negf %48 : vector<2x128xf32>
    %50 = math.exp %49 : vector<2x128xf32>
    %cst_21 = arith.constant 1.000000e+00 : f32
    %51 = vector.broadcast %cst_21 : f32 to vector<2x128xf32>
    %52 = arith.addf %51, %50 : vector<2x128xf32>
    %53 = arith.divf %51, %52 : vector<2x128xf32>
    %54 = vector.extract_strided_slice %47 {offsets = [0, 128], sizes = [2, 128], strides = [1, 1]} : vector<2x512xf32> to vector<2x128xf32>
    %55 = arith.negf %54 : vector<2x128xf32>
    %56 = math.exp %55 : vector<2x128xf32>
    %cst_22 = arith.constant 1.000000e+00 : f32
    %57 = vector.broadcast %cst_22 : f32 to vector<2x128xf32>
    %58 = arith.addf %57, %56 : vector<2x128xf32>
    %59 = arith.divf %57, %58 : vector<2x128xf32>
    %60 = vector.extract_strided_slice %47 {offsets = [0, 256], sizes = [2, 128], strides = [1, 1]} : vector<2x512xf32> to vector<2x128xf32>
    %61 = math.tanh %60 : vector<2x128xf32>
    %62 = vector.extract_strided_slice %47 {offsets = [0, 384], sizes = [2, 128], strides = [1, 1]} : vector<2x512xf32> to vector<2x128xf32>
    %63 = arith.negf %62 : vector<2x128xf32>
    %64 = math.exp %63 : vector<2x128xf32>
    %cst_23 = arith.constant 1.000000e+00 : f32
    %65 = vector.broadcast %cst_23 : f32 to vector<2x128xf32>
    %66 = arith.addf %65, %64 : vector<2x128xf32>
    %67 = arith.divf %65, %66 : vector<2x128xf32>
    %68 = arith.mulf %59, %38 : vector<2x128xf32>
    %69 = arith.mulf %53, %61 : vector<2x128xf32>
    %70 = arith.addf %68, %69 : vector<2x128xf32>
    %71 = math.tanh %70 : vector<2x128xf32>
    %72 = arith.mulf %67, %71 : vector<2x128xf32>
    %c2_i32_24 = arith.constant 2 : i32
    %c2_i32_25 = arith.constant 2 : i32
    %73 = arith.muli %c2_i32_24, %c2_i32_25 : i32
    %74 = arith.index_cast %73 : i32 to index
    %c0_26 = arith.constant 0 : index
    %75 = vector.load %arg9[%74, %c0_26] : memref<16x512xf32, #tpu.memory_space<vmem>>, vector<2x512xf32>
    %76 = arith.truncf %72 : vector<2x128xf32> to vector<2x128xbf16>
    %c0_27 = arith.constant 0 : index
    %c0_28 = arith.constant 0 : index
    %77 = vector.load %arg2[%c0_27, %c0_28] : memref<128x512xbf16, #tpu.memory_space<vmem>>, vector<128x512xbf16>
    %cst_29 = arith.constant dense<0.000000e+00> : vector<2x512xf32>
    %78 = tpu.matmul %76, %77, %cst_29 {dimension_numbers = #tpu.dot_dimension_numbers<[1], [0], [0], [1], [0, 0, 1, 1], [], []>} : vector<2x128xbf16>, vector<128x512xbf16>, vector<2x512xf32> -> vector<2x512xf32>
    %79 = arith.addf %75, %78 : vector<2x512xf32>
    %80 = vector.extract_strided_slice %79 {offsets = [0, 0], sizes = [2, 128], strides = [1, 1]} : vector<2x512xf32> to vector<2x128xf32>
    %81 = arith.negf %80 : vector<2x128xf32>
    %82 = math.exp %81 : vector<2x128xf32>
    %cst_30 = arith.constant 1.000000e+00 : f32
    %83 = vector.broadcast %cst_30 : f32 to vector<2x128xf32>
    %84 = arith.addf %83, %82 : vector<2x128xf32>
    %85 = arith.divf %83, %84 : vector<2x128xf32>
    %86 = vector.extract_strided_slice %79 {offsets = [0, 128], sizes = [2, 128], strides = [1, 1]} : vector<2x512xf32> to vector<2x128xf32>
    %87 = arith.negf %86 : vector<2x128xf32>
    %88 = math.exp %87 : vector<2x128xf32>
    %cst_31 = arith.constant 1.000000e+00 : f32
    %89 = vector.broadcast %cst_31 : f32 to vector<2x128xf32>
    %90 = arith.addf %89, %88 : vector<2x128xf32>
    %91 = arith.divf %89, %90 : vector<2x128xf32>
    %92 = vector.extract_strided_slice %79 {offsets = [0, 256], sizes = [2, 128], strides = [1, 1]} : vector<2x512xf32> to vector<2x128xf32>
    %93 = math.tanh %92 : vector<2x128xf32>
    %94 = vector.extract_strided_slice %79 {offsets = [0, 384], sizes = [2, 128], strides = [1, 1]} : vector<2x512xf32> to vector<2x128xf32>
    %95 = arith.negf %94 : vector<2x128xf32>
    %96 = math.exp %95 : vector<2x128xf32>
    %cst_32 = arith.constant 1.000000e+00 : f32
    %97 = vector.broadcast %cst_32 : f32 to vector<2x128xf32>
    %98 = arith.addf %97, %96 : vector<2x128xf32>
    %99 = arith.divf %97, %98 : vector<2x128xf32>
    %100 = arith.mulf %91, %70 : vector<2x128xf32>
    %101 = arith.mulf %85, %93 : vector<2x128xf32>
    %102 = arith.addf %100, %101 : vector<2x128xf32>
    %103 = math.tanh %102 : vector<2x128xf32>
    %104 = arith.mulf %99, %103 : vector<2x128xf32>
    %c3_i32 = arith.constant 3 : i32
    %c2_i32_33 = arith.constant 2 : i32
    %105 = arith.muli %c3_i32, %c2_i32_33 : i32
    %106 = arith.index_cast %105 : i32 to index
    %c0_34 = arith.constant 0 : index
    %107 = vector.load %arg9[%106, %c0_34] : memref<16x512xf32, #tpu.memory_space<vmem>>, vector<2x512xf32>
    %108 = arith.truncf %104 : vector<2x128xf32> to vector<2x128xbf16>
    %c0_35 = arith.constant 0 : index
    %c0_36 = arith.constant 0 : index
    %109 = vector.load %arg2[%c0_35, %c0_36] : memref<128x512xbf16, #tpu.memory_space<vmem>>, vector<128x512xbf16>
    %cst_37 = arith.constant dense<0.000000e+00> : vector<2x512xf32>
    %110 = tpu.matmul %108, %109, %cst_37 {dimension_numbers = #tpu.dot_dimension_numbers<[1], [0], [0], [1], [0, 0, 1, 1], [], []>} : vector<2x128xbf16>, vector<128x512xbf16>, vector<2x512xf32> -> vector<2x512xf32>
    %111 = arith.addf %107, %110 : vector<2x512xf32>
    %112 = vector.extract_strided_slice %111 {offsets = [0, 0], sizes = [2, 128], strides = [1, 1]} : vector<2x512xf32> to vector<2x128xf32>
    %113 = arith.negf %112 : vector<2x128xf32>
    %114 = math.exp %113 : vector<2x128xf32>
    %cst_38 = arith.constant 1.000000e+00 : f32
    %115 = vector.broadcast %cst_38 : f32 to vector<2x128xf32>
    %116 = arith.addf %115, %114 : vector<2x128xf32>
    %117 = arith.divf %115, %116 : vector<2x128xf32>
    %118 = vector.extract_strided_slice %111 {offsets = [0, 128], sizes = [2, 128], strides = [1, 1]} : vector<2x512xf32> to vector<2x128xf32>
    %119 = arith.negf %118 : vector<2x128xf32>
    %120 = math.exp %119 : vector<2x128xf32>
    %cst_39 = arith.constant 1.000000e+00 : f32
    %121 = vector.broadcast %cst_39 : f32 to vector<2x128xf32>
    %122 = arith.addf %121, %120 : vector<2x128xf32>
    %123 = arith.divf %121, %122 : vector<2x128xf32>
    %124 = vector.extract_strided_slice %111 {offsets = [0, 256], sizes = [2, 128], strides = [1, 1]} : vector<2x512xf32> to vector<2x128xf32>
    %125 = math.tanh %124 : vector<2x128xf32>
    %126 = vector.extract_strided_slice %111 {offsets = [0, 384], sizes = [2, 128], strides = [1, 1]} : vector<2x512xf32> to vector<2x128xf32>
    %127 = arith.negf %126 : vector<2x128xf32>
    %128 = math.exp %127 : vector<2x128xf32>
    %cst_40 = arith.constant 1.000000e+00 : f32
    %129 = vector.broadcast %cst_40 : f32 to vector<2x128xf32>
    %130 = arith.addf %129, %128 : vector<2x128xf32>
    %131 = arith.divf %129, %130 : vector<2x128xf32>
    %132 = arith.mulf %123, %102 : vector<2x128xf32>
    %133 = arith.mulf %117, %125 : vector<2x128xf32>
    %134 = arith.addf %132, %133 : vector<2x128xf32>
    %135 = math.tanh %134 : vector<2x128xf32>
    %136 = arith.mulf %131, %135 : vector<2x128xf32>
    %c4_i32 = arith.constant 4 : i32
    %c2_i32_41 = arith.constant 2 : i32
    %137 = arith.muli %c4_i32, %c2_i32_41 : i32
    %138 = arith.index_cast %137 : i32 to index
    %c0_42 = arith.constant 0 : index
    %139 = vector.load %arg9[%138, %c0_42] : memref<16x512xf32, #tpu.memory_space<vmem>>, vector<2x512xf32>
    %140 = arith.truncf %136 : vector<2x128xf32> to vector<2x128xbf16>
    %c0_43 = arith.constant 0 : index
    %c0_44 = arith.constant 0 : index
    %141 = vector.load %arg2[%c0_43, %c0_44] : memref<128x512xbf16, #tpu.memory_space<vmem>>, vector<128x512xbf16>
    %cst_45 = arith.constant dense<0.000000e+00> : vector<2x512xf32>
    %142 = tpu.matmul %140, %141, %cst_45 {dimension_numbers = #tpu.dot_dimension_numbers<[1], [0], [0], [1], [0, 0, 1, 1], [], []>} : vector<2x128xbf16>, vector<128x512xbf16>, vector<2x512xf32> -> vector<2x512xf32>
    %143 = arith.addf %139, %142 : vector<2x512xf32>
    %144 = vector.extract_strided_slice %143 {offsets = [0, 0], sizes = [2, 128], strides = [1, 1]} : vector<2x512xf32> to vector<2x128xf32>
    %145 = arith.negf %144 : vector<2x128xf32>
    %146 = math.exp %145 : vector<2x128xf32>
    %cst_46 = arith.constant 1.000000e+00 : f32
    %147 = vector.broadcast %cst_46 : f32 to vector<2x128xf32>
    %148 = arith.addf %147, %146 : vector<2x128xf32>
    %149 = arith.divf %147, %148 : vector<2x128xf32>
    %150 = vector.extract_strided_slice %143 {offsets = [0, 128], sizes = [2, 128], strides = [1, 1]} : vector<2x512xf32> to vector<2x128xf32>
    %151 = arith.negf %150 : vector<2x128xf32>
    %152 = math.exp %151 : vector<2x128xf32>
    %cst_47 = arith.constant 1.000000e+00 : f32
    %153 = vector.broadcast %cst_47 : f32 to vector<2x128xf32>
    %154 = arith.addf %153, %152 : vector<2x128xf32>
    %155 = arith.divf %153, %154 : vector<2x128xf32>
    %156 = vector.extract_strided_slice %143 {offsets = [0, 256], sizes = [2, 128], strides = [1, 1]} : vector<2x512xf32> to vector<2x128xf32>
    %157 = math.tanh %156 : vector<2x128xf32>
    %158 = vector.extract_strided_slice %143 {offsets = [0, 384], sizes = [2, 128], strides = [1, 1]} : vector<2x512xf32> to vector<2x128xf32>
    %159 = arith.negf %158 : vector<2x128xf32>
    %160 = math.exp %159 : vector<2x128xf32>
    %cst_48 = arith.constant 1.000000e+00 : f32
    %161 = vector.broadcast %cst_48 : f32 to vector<2x128xf32>
    %162 = arith.addf %161, %160 : vector<2x128xf32>
    %163 = arith.divf %161, %162 : vector<2x128xf32>
    %164 = arith.mulf %155, %134 : vector<2x128xf32>
    %165 = arith.mulf %149, %157 : vector<2x128xf32>
    %166 = arith.addf %164, %165 : vector<2x128xf32>
    %167 = math.tanh %166 : vector<2x128xf32>
    %168 = arith.mulf %163, %167 : vector<2x128xf32>
    %c5_i32 = arith.constant 5 : i32
    %c2_i32_49 = arith.constant 2 : i32
    %169 = arith.muli %c5_i32, %c2_i32_49 : i32
    %170 = arith.index_cast %169 : i32 to index
    %c0_50 = arith.constant 0 : index
    %171 = vector.load %arg9[%170, %c0_50] : memref<16x512xf32, #tpu.memory_space<vmem>>, vector<2x512xf32>
    %172 = arith.truncf %168 : vector<2x128xf32> to vector<2x128xbf16>
    %c0_51 = arith.constant 0 : index
    %c0_52 = arith.constant 0 : index
    %173 = vector.load %arg2[%c0_51, %c0_52] : memref<128x512xbf16, #tpu.memory_space<vmem>>, vector<128x512xbf16>
    %cst_53 = arith.constant dense<0.000000e+00> : vector<2x512xf32>
    %174 = tpu.matmul %172, %173, %cst_53 {dimension_numbers = #tpu.dot_dimension_numbers<[1], [0], [0], [1], [0, 0, 1, 1], [], []>} : vector<2x128xbf16>, vector<128x512xbf16>, vector<2x512xf32> -> vector<2x512xf32>
    %175 = arith.addf %171, %174 : vector<2x512xf32>
    %176 = vector.extract_strided_slice %175 {offsets = [0, 0], sizes = [2, 128], strides = [1, 1]} : vector<2x512xf32> to vector<2x128xf32>
    %177 = arith.negf %176 : vector<2x128xf32>
    %178 = math.exp %177 : vector<2x128xf32>
    %cst_54 = arith.constant 1.000000e+00 : f32
    %179 = vector.broadcast %cst_54 : f32 to vector<2x128xf32>
    %180 = arith.addf %179, %178 : vector<2x128xf32>
    %181 = arith.divf %179, %180 : vector<2x128xf32>
    %182 = vector.extract_strided_slice %175 {offsets = [0, 128], sizes = [2, 128], strides = [1, 1]} : vector<2x512xf32> to vector<2x128xf32>
    %183 = arith.negf %182 : vector<2x128xf32>
    %184 = math.exp %183 : vector<2x128xf32>
    %cst_55 = arith.constant 1.000000e+00 : f32
    %185 = vector.broadcast %cst_55 : f32 to vector<2x128xf32>
    %186 = arith.addf %185, %184 : vector<2x128xf32>
    %187 = arith.divf %185, %186 : vector<2x128xf32>
    %188 = vector.extract_strided_slice %175 {offsets = [0, 256], sizes = [2, 128], strides = [1, 1]} : vector<2x512xf32> to vector<2x128xf32>
    %189 = math.tanh %188 : vector<2x128xf32>
    %190 = vector.extract_strided_slice %175 {offsets = [0, 384], sizes = [2, 128], strides = [1, 1]} : vector<2x512xf32> to vector<2x128xf32>
    %191 = arith.negf %190 : vector<2x128xf32>
    %192 = math.exp %191 : vector<2x128xf32>
    %cst_56 = arith.constant 1.000000e+00 : f32
    %193 = vector.broadcast %cst_56 : f32 to vector<2x128xf32>
    %194 = arith.addf %193, %192 : vector<2x128xf32>
    %195 = arith.divf %193, %194 : vector<2x128xf32>
    %196 = arith.mulf %187, %166 : vector<2x128xf32>
    %197 = arith.mulf %181, %189 : vector<2x128xf32>
    %198 = arith.addf %196, %197 : vector<2x128xf32>
    %199 = math.tanh %198 : vector<2x128xf32>
    %200 = arith.mulf %195, %199 : vector<2x128xf32>
    %c6_i32 = arith.constant 6 : i32
    %c2_i32_57 = arith.constant 2 : i32
    %201 = arith.muli %c6_i32, %c2_i32_57 : i32
    %202 = arith.index_cast %201 : i32 to index
    %c0_58 = arith.constant 0 : index
    %203 = vector.load %arg9[%202, %c0_58] : memref<16x512xf32, #tpu.memory_space<vmem>>, vector<2x512xf32>
    %204 = arith.truncf %200 : vector<2x128xf32> to vector<2x128xbf16>
    %c0_59 = arith.constant 0 : index
    %c0_60 = arith.constant 0 : index
    %205 = vector.load %arg2[%c0_59, %c0_60] : memref<128x512xbf16, #tpu.memory_space<vmem>>, vector<128x512xbf16>
    %cst_61 = arith.constant dense<0.000000e+00> : vector<2x512xf32>
    %206 = tpu.matmul %204, %205, %cst_61 {dimension_numbers = #tpu.dot_dimension_numbers<[1], [0], [0], [1], [0, 0, 1, 1], [], []>} : vector<2x128xbf16>, vector<128x512xbf16>, vector<2x512xf32> -> vector<2x512xf32>
    %207 = arith.addf %203, %206 : vector<2x512xf32>
    %208 = vector.extract_strided_slice %207 {offsets = [0, 0], sizes = [2, 128], strides = [1, 1]} : vector<2x512xf32> to vector<2x128xf32>
    %209 = arith.negf %208 : vector<2x128xf32>
    %210 = math.exp %209 : vector<2x128xf32>
    %cst_62 = arith.constant 1.000000e+00 : f32
    %211 = vector.broadcast %cst_62 : f32 to vector<2x128xf32>
    %212 = arith.addf %211, %210 : vector<2x128xf32>
    %213 = arith.divf %211, %212 : vector<2x128xf32>
    %214 = vector.extract_strided_slice %207 {offsets = [0, 128], sizes = [2, 128], strides = [1, 1]} : vector<2x512xf32> to vector<2x128xf32>
    %215 = arith.negf %214 : vector<2x128xf32>
    %216 = math.exp %215 : vector<2x128xf32>
    %cst_63 = arith.constant 1.000000e+00 : f32
    %217 = vector.broadcast %cst_63 : f32 to vector<2x128xf32>
    %218 = arith.addf %217, %216 : vector<2x128xf32>
    %219 = arith.divf %217, %218 : vector<2x128xf32>
    %220 = vector.extract_strided_slice %207 {offsets = [0, 256], sizes = [2, 128], strides = [1, 1]} : vector<2x512xf32> to vector<2x128xf32>
    %221 = math.tanh %220 : vector<2x128xf32>
    %222 = vector.extract_strided_slice %207 {offsets = [0, 384], sizes = [2, 128], strides = [1, 1]} : vector<2x512xf32> to vector<2x128xf32>
    %223 = arith.negf %222 : vector<2x128xf32>
    %224 = math.exp %223 : vector<2x128xf32>
    %cst_64 = arith.constant 1.000000e+00 : f32
    %225 = vector.broadcast %cst_64 : f32 to vector<2x128xf32>
    %226 = arith.addf %225, %224 : vector<2x128xf32>
    %227 = arith.divf %225, %226 : vector<2x128xf32>
    %228 = arith.mulf %219, %198 : vector<2x128xf32>
    %229 = arith.mulf %213, %221 : vector<2x128xf32>
    %230 = arith.addf %228, %229 : vector<2x128xf32>
    %231 = math.tanh %230 : vector<2x128xf32>
    %232 = arith.mulf %227, %231 : vector<2x128xf32>
    %c7_i32 = arith.constant 7 : i32
    %c2_i32_65 = arith.constant 2 : i32
    %233 = arith.muli %c7_i32, %c2_i32_65 : i32
    %234 = arith.index_cast %233 : i32 to index
    %c0_66 = arith.constant 0 : index
    %235 = vector.load %arg9[%234, %c0_66] : memref<16x512xf32, #tpu.memory_space<vmem>>, vector<2x512xf32>
    %236 = arith.truncf %232 : vector<2x128xf32> to vector<2x128xbf16>
    %c0_67 = arith.constant 0 : index
    %c0_68 = arith.constant 0 : index
    %237 = vector.load %arg2[%c0_67, %c0_68] : memref<128x512xbf16, #tpu.memory_space<vmem>>, vector<128x512xbf16>
    %cst_69 = arith.constant dense<0.000000e+00> : vector<2x512xf32>
    %238 = tpu.matmul %236, %237, %cst_69 {dimension_numbers = #tpu.dot_dimension_numbers<[1], [0], [0], [1], [0, 0, 1, 1], [], []>} : vector<2x128xbf16>, vector<128x512xbf16>, vector<2x512xf32> -> vector<2x512xf32>
    %239 = arith.addf %235, %238 : vector<2x512xf32>
    %240 = vector.extract_strided_slice %239 {offsets = [0, 0], sizes = [2, 128], strides = [1, 1]} : vector<2x512xf32> to vector<2x128xf32>
    %241 = arith.negf %240 : vector<2x128xf32>
    %242 = math.exp %241 : vector<2x128xf32>
    %cst_70 = arith.constant 1.000000e+00 : f32
    %243 = vector.broadcast %cst_70 : f32 to vector<2x128xf32>
    %244 = arith.addf %243, %242 : vector<2x128xf32>
    %245 = arith.divf %243, %244 : vector<2x128xf32>
    %246 = vector.extract_strided_slice %239 {offsets = [0, 128], sizes = [2, 128], strides = [1, 1]} : vector<2x512xf32> to vector<2x128xf32>
    %247 = arith.negf %246 : vector<2x128xf32>
    %248 = math.exp %247 : vector<2x128xf32>
    %cst_71 = arith.constant 1.000000e+00 : f32
    %249 = vector.broadcast %cst_71 : f32 to vector<2x128xf32>
    %250 = arith.addf %249, %248 : vector<2x128xf32>
    %251 = arith.divf %249, %250 : vector<2x128xf32>
    %252 = vector.extract_strided_slice %239 {offsets = [0, 256], sizes = [2, 128], strides = [1, 1]} : vector<2x512xf32> to vector<2x128xf32>
    %253 = math.tanh %252 : vector<2x128xf32>
    %254 = vector.extract_strided_slice %239 {offsets = [0, 384], sizes = [2, 128], strides = [1, 1]} : vector<2x512xf32> to vector<2x128xf32>
    %255 = arith.negf %254 : vector<2x128xf32>
    %256 = math.exp %255 : vector<2x128xf32>
    %cst_72 = arith.constant 1.000000e+00 : f32
    %257 = vector.broadcast %cst_72 : f32 to vector<2x128xf32>
    %258 = arith.addf %257, %256 : vector<2x128xf32>
    %259 = arith.divf %257, %258 : vector<2x128xf32>
    %260 = arith.mulf %251, %230 : vector<2x128xf32>
    %261 = arith.mulf %245, %253 : vector<2x128xf32>
    %262 = arith.addf %260, %261 : vector<2x128xf32>
    %263 = math.tanh %262 : vector<2x128xf32>
    %264 = arith.mulf %259, %263 : vector<2x128xf32>
    %c8_i32 = arith.constant 8 : i32
    %c0_73 = arith.constant 0 : index
    %c0_74 = arith.constant 0 : index
    %265 = vector.load %arg7[%c0_73, %c0_74] : memref<2x128xf32, #tpu.memory_space<vmem>>, vector<2x128xf32>
    tpu.vector_store %arg7[%c0_73, %c0_74], %264 {strides = array<i32>} : memref<2x128xf32, #tpu.memory_space<vmem>>, vector<2x128xf32>,
    %c0_75 = arith.constant 0 : index
    %c0_76 = arith.constant 0 : index
    %266 = vector.load %arg8[%c0_75, %c0_76] : memref<2x128xf32, #tpu.memory_space<vmem>>, vector<2x128xf32>
    tpu.vector_store %arg8[%c0_75, %c0_76], %262 {strides = array<i32>} : memref<2x128xf32, #tpu.memory_space<vmem>>, vector<2x128xf32>,
    %267 = arith.truncf %264 : vector<2x128xf32> to vector<2x128xbf16>
    %c0_77 = arith.constant 0 : index
    %c0_78 = arith.constant 0 : index
    %268 = vector.load %arg4[%c0_77, %c0_78] : memref<128x256xbf16, #tpu.memory_space<vmem>>, vector<128x256xbf16>
    %cst_79 = arith.constant dense<0.000000e+00> : vector<2x256xf32>
    %269 = tpu.matmul %267, %268, %cst_79 {dimension_numbers = #tpu.dot_dimension_numbers<[1], [0], [0], [1], [0, 0, 1, 1], [], []>} : vector<2x128xbf16>, vector<128x256xbf16>, vector<2x256xf32> -> vector<2x256xf32>
    %c0_80 = arith.constant 0 : index
    %c0_81 = arith.constant 0 : index
    %270 = vector.load %arg5[%c0_80, %c0_81] : memref<1x256xf32, #tpu.memory_space<vmem>>, vector<1x256xf32>
    %271 = vector.broadcast %270 : vector<1x256xf32> to vector<2x256xf32>
    %272 = arith.addf %269, %271 : vector<2x256xf32>
    %c0_82 = arith.constant 0 : index
    %c0_83 = arith.constant 0 : index
    %273 = vector.load %arg6[%c0_82, %c0_83] : memref<2x256xf32, #tpu.memory_space<vmem>>, vector<2x256xf32>
    tpu.vector_store %arg6[%c0_82, %c0_83], %272 {strides = array<i32>} : memref<2x256xf32, #tpu.memory_space<vmem>>, vector<2x256xf32>,
    return
  }
}

</mosaic_0001>

<llo_original>
// kernel: lstm_model_forward.1
$region0: #{lstm_model_forward.1}
  #allocation0 [shape = 'u32[]', space=smem, size = 0x4, offset = 0x4, fixed_abs, tag = 'smem constant byte address 0x4 - core index']
  #allocation1 [shape = 'u32[144,128]{1,0:T(1,128)}', space=vmem, size = 0x12000, scoped, tag = 'internal scratch']
  #allocation2 [shape = 'f32[16,512]{1,0:T(8,128)}', space=vmem, size = 0x8000, scoped, tag = 'scratch operand']
  %s0 = inlined_call_operand.vmem [shape: bf16[16,64], index: 0, kind: input, shape index: {}]
  %s1 = inlined_call_operand.vmem [shape: bf16[64,512], index: 1, kind: input, shape index: {}]
  %s2 = inlined_call_operand.vmem [shape: bf16[128,512], index: 2, kind: input, shape index: {}]
  %s3 = inlined_call_operand.vmem [shape: f32[1,512], index: 3, kind: input, shape index: {}]
  %s4 = inlined_call_operand.vmem [shape: bf16[128,256], index: 4, kind: input, shape index: {}]
  %s5 = inlined_call_operand.vmem [shape: f32[1,256], index: 5, kind: input, shape index: {}]
  %s6 = inlined_call_operand.hbm [shape: f32[2,256], index: 6, kind: output, shape index: {0}]
  %s7 = inlined_call_operand.hbm [shape: f32[2,128], index: 7, kind: output, shape index: {1}]
  %s8 = inlined_call_operand.hbm [shape: f32[2,128], index: 8, kind: output, shape index: {2}]
  %9 = xla_tuple %s6, %s7, %s8
  %s10 = sld [smem:[#allocation0]]
  $region50: #{lstm_model_forward.1} parent=0
    _
  %s12 = ssub.s32 1, %s10
  %s13 = scalar_select 0, %s12, %s10
  $region1: #{lstm_model_forward.1} parent=0
    #allocation3 [shape = 'u8[2048]{0}', space=vmem, size = 0x800, scoped, tag = 'output window, operand 0, single buffered']
    #allocation4 [shape = 's32[1]{0}', space=sflag, size = 0x4, scoped, tag = 'scoped memory for lstm_model_forward.1']
    #allocation5 [shape = 'u8[1024]{0}', space=vmem, size = 0x400, scoped, tag = 'output window, operand 1, single buffered']
    #allocation6 [shape = 's32[1]{0}', space=sflag, size = 0x4, scoped, tag = 'scoped memory for lstm_model_forward.1']
    #allocation7 [shape = 'u8[1024]{0}', space=vmem, size = 0x400, scoped, tag = 'output window, operand 2, single buffered']
    %14 = vsyncpa [#allocation4], 0
    %15 = vsyncpa [#allocation6], 0
    // Predicated region
    $region2: #{lstm_model_forward.1} parent=1 // pred_check
      _
    $region3: #{lstm_model_forward.1} parent=1 // pred_check_branch
      %17 = sbr.rel (0) target = $region5
    $region4: #{lstm_model_forward.1} parent=1 // pred_region
      _
    $region5: #{lstm_model_forward.1} parent=1 // pred_fallthru
      _
    // Predicated region
    $region6: #{lstm_model_forward.1} parent=1 // pred_check
      _
    $region7: #{lstm_model_forward.1} parent=1 // pred_check_branch
      %19 = sbr.rel (0) target = $region9
    $region8: #{lstm_model_forward.1} parent=1 // pred_region
      _
    $region9: #{lstm_model_forward.1} parent=1 // pred_fallthru
      _
    // Predicated region
    $region10: #{lstm_model_forward.1} parent=1 // pred_check
      _
    $region11: #{lstm_model_forward.1} parent=1 // pred_check_branch
      %21 = sbr.rel (0) target = $region13
    $region12: #{lstm_model_forward.1} parent=1 // pred_region
      _
    $region13: #{lstm_model_forward.1} parent=1 // pred_fallthru
      _
    // Predicated region
    $region14: #{lstm_model_forward.1} parent=1 // pred_check
      _
    $region15: #{lstm_model_forward.1} parent=1 // pred_check_branch
      %23 = sbr.rel (0) target = $region17
    $region16: #{lstm_model_forward.1} parent=1 // pred_region
      _
    $region17: #{lstm_model_forward.1} parent=1 // pred_fallthru
      _
    // Predicated region
    $region18: #{lstm_model_forward.1} parent=1 // pred_check
      _
    $region19: #{lstm_model_forward.1} parent=1 // pred_check_branch
      %25 = sbr.rel (0) target = $region21
    $region20: #{lstm_model_forward.1} parent=1 // pred_region
      _
    $region21: #{lstm_model_forward.1} parent=1 // pred_fallthru
      _
    // Predicated region
    $region22: #{lstm_model_forward.1} parent=1 // pred_check
      _
    $region23: #{lstm_model_forward.1} parent=1 // pred_check_branch
      %27 = sbr.rel (0) target = $region25
    $region24: #{lstm_model_forward.1} parent=1 // pred_region
      _
    $region25: #{lstm_model_forward.1} parent=1 // pred_fallthru
      _
    %v29 = vld [vmem:[%s0] sm:$0xf]
    %v30 = vld [vmem:[%s0 + $0x4] sm:$0xf]
    %v31 = vld [vmem:[%s1] sm:$0xff]
    %v32 = vld [vmem:[%s1 + $0x8] sm:$0xff]
    %v33 = vld [vmem:[%s1 + $0x10] sm:$0xff]
    %v34 = vld [vmem:[%s1 + $0x18] sm:$0xff]
    %v35 = vld [vmem:[%s1 + $0x20] sm:$0xff]
    %v36 = vld [vmem:[%s1 + $0x28] sm:$0xff]
    %v37 = vld [vmem:[%s1 + $0x30] sm:$0xff]
    %v38 = vld [vmem:[%s1 + $0x38] sm:$0xff]
    %v39 = vld [vmem:[%s1 + $0x40] sm:$0xff]
    %v40 = vld [vmem:[%s1 + $0x48] sm:$0xff]
    %v41 = vld [vmem:[%s1 + $0x50] sm:$0xff]
    %v42 = vld [vmem:[%s1 + $0x58] sm:$0xff]
    %v43 = vld [vmem:[%s1 + $0x60] sm:$0xff]
    %v44 = vld [vmem:[%s1 + $0x68] sm:$0xff]
    %v45 = vld [vmem:[%s1 + $0x70] sm:$0xff]
    %v46 = vld [vmem:[%s1 + $0x78] sm:$0xff]
    %v47 = vld [vmem:[%s3] sm:$0xf]
    %v49 = vlaneseq
    %v50 = vshrl.u32 %v49, 7
    %v51 = vsub.s32 0, %v50
    %v52 = vrot.slane %v47, %v51
    %v53 = vlaneseq
    %v54 = vshrl.u32 %v53, 7
    %v55 = vsub.s32 1, %v54
    %v56 = vrot.slane %v47, %v55
    %v57 = vlaneseq
    %v58 = vshrl.u32 %v57, 7
    %v59 = vsub.s32 2, %v58
    %v60 = vrot.slane %v47, %v59
    %v61 = vlaneseq
    %v62 = vshrl.u32 %v61, 7
    %v63 = vsub.s32 3, %v62
    %v64 = vrot.slane %v47, %v63
    %v71 = vunpack.c.l.b16 %v29
    %v72 = vunpack.c.l.b16 %v30
    %v73 = vpack.c.b16 %v72, %v71
    %v90 = vunpack.c.l.b16 %v31
    %v91 = vunpack.c.h.b16 %v31
    %v92 = vunpack.c.l.b16 %v32
    %v93 = vunpack.c.h.b16 %v32
    %v94 = vunpack.c.l.b16 %v33
    %v95 = vunpack.c.h.b16 %v33
    %v96 = vunpack.c.l.b16 %v34
    %v97 = vunpack.c.h.b16 %v34
    %v98 = vunpack.c.l.b16 %v35
    %v99 = vunpack.c.h.b16 %v35
    %v100 = vunpack.c.l.b16 %v36
    %v101 = vunpack.c.h.b16 %v36
    %v102 = vunpack.c.l.b16 %v37
    %v103 = vunpack.c.h.b16 %v37
    %v104 = vunpack.c.l.b16 %v38
    %v105 = vunpack.c.h.b16 %v38
    %v106 = vunpack.c.l.b16 %v39
    %v107 = vunpack.c.h.b16 %v39
    %v108 = vunpack.c.l.b16 %v40
    %v109 = vunpack.c.h.b16 %v40
    %v110 = vunpack.c.l.b16 %v41
    %v111 = vunpack.c.h.b16 %v41
    %v112 = vunpack.c.l.b16 %v42
    %v113 = vunpack.c.h.b16 %v42
    %v114 = vunpack.c.l.b16 %v43
    %v115 = vunpack.c.h.b16 %v43
    %v116 = vunpack.c.l.b16 %v44
    %v117 = vunpack.c.h.b16 %v44
    %v118 = vunpack.c.l.b16 %v45
    %v119 = vunpack.c.h.b16 %v45
    %v120 = vunpack.c.l.b16 %v46
    %v121 = vunpack.c.h.b16 %v46
    %v122 = vpack.c.b16 %v94, %v90
    %v123 = vpack.c.b16 %v95, %v91
    %v124 = vpack.c.b16 %v96, %v92
    %v125 = vpack.c.b16 %v97, %v93
    %v126 = vpack.c.b16 %v102, %v98
    %v127 = vpack.c.b16 %v103, %v99
    %v128 = vpack.c.b16 %v104, %v100
    %v129 = vpack.c.b16 %v105, %v101
    %v130 = vpack.c.b16 %v110, %v106
    %v131 = vpack.c.b16 %v111, %v107
    %v132 = vpack.c.b16 %v112, %v108
    %v133 = vpack.c.b16 %v113, %v109
    %v134 = vpack.c.b16 %v118, %v114
    %v135 = vpack.c.b16 %v119, %v115
    %v136 = vpack.c.b16 %v120, %v116
    %v137 = vpack.c.b16 %v121, %v117
    %vm154 = vcmask 523264
    %v156 = vsel %vm154, %v73, 0
    %158 = vmatprep.subr.bf16.mxu0 %v123
    %159 = vmatpush1.bf16.msra.mxu0 %v122
    %160 = vmatprep.subr.bf16.mxu0 %v127
    %161 = vmatpush1.bf16.msra.mxu0 %v126
    %162 = vmatprep.subr.bf16.mxu0 %v131
    %163 = vmatpush1.bf16.msra.mxu0 %v130
    %164 = vmatprep.subr.bf16.mxu0 %v135
    %165 = vmatpush1.bf16.msra.mxu0 %v134
    %166 = vmatprep.subr.bf16.mxu0 0
    %167 = vmatpush1.bf16.msra.mxu0 0
    %168 = vmatprep.subr.bf16.mxu0 0
    %169 = vmatpush1.bf16.msra.mxu0 0
    %170 = vmatprep.subr.bf16.mxu0 0
    %171 = vmatpush1.bf16.msra.mxu0 0
    %172 = vmatprep.subr.bf16.mxu0 0
    %173 = vmatpush1.bf16.msra.mxu0 0
    %174 = vmatprep.subr.bf16.mxu0 0
    %175 = vmatpush1.bf16.msra.mxu0 0
    %176 = vmatprep.subr.bf16.mxu0 0
    %177 = vmatpush1.bf16.msra.mxu0 0
    %178 = vmatprep.subr.bf16.mxu0 0
    %179 = vmatpush1.bf16.msra.mxu0 0
    %180 = vmatprep.subr.bf16.mxu0 0
    %181 = vmatpush1.bf16.msra.mxu0 0
    %182 = vmatprep.subr.bf16.mxu0 0
    %183 = vmatpush1.bf16.msra.mxu0 0
    %184 = vmatprep.subr.bf16.mxu0 0
    %185 = vmatpush1.bf16.msra.mxu0 0
    %186 = vmatprep.subr.bf16.mxu0 0
    %187 = vmatpush1.bf16.msra.mxu0 0
    %188 = vmatprep.subr.bf16.mxu0 0
    %189 = vmatpush1.bf16.msra.mxu0 0
    %190 = vmatprep.mubr.bf16.mxu0 0
    %191 = vmatmul.mubr.bf16.gmra.mrb[0].mxu0 %v156
    %v192 = vpop.f32.mrb[0].mxu0
    %v193 = vadd.f32 %v52, %v192
    %v194 = vpop.f32.mrb[0].mxu0
    %v195 = vadd.f32 %v56, %v194
    %v196 = vpop.f32.mrb[0].mxu0
    %v197 = vadd.f32 %v52, %v196
    %v198 = vpop.f32.mrb[0].mxu0
    %v199 = vadd.f32 %v56, %v198
    %200 = vdwg.mxu0
    %201 = vmatprep.subr.bf16.mxu0 %v125
    %202 = vmatpush1.bf16.msra.mxu0 %v124
    %203 = vmatprep.subr.bf16.mxu0 %v129
    %204 = vmatpush1.bf16.msra.mxu0 %v128
    %205 = vmatprep.subr.bf16.mxu0 %v133
    %206 = vmatpush1.bf16.msra.mxu0 %v132
    %207 = vmatprep.subr.bf16.mxu0 %v137
    %208 = vmatpush1.bf16.msra.mxu0 %v136
    %209 = vmatprep.subr.bf16.mxu0 0
    %210 = vmatpush1.bf16.msra.mxu0 0
    %211 = vmatprep.subr.bf16.mxu0 0
    %212 = vmatpush1.bf16.msra.mxu0 0
    %213 = vmatprep.subr.bf16.mxu0 0
    %214 = vmatpush1.bf16.msra.mxu0 0
    %215 = vmatprep.subr.bf16.mxu0 0
    %216 = vmatpush1.bf16.msra.mxu0 0
    %217 = vmatprep.subr.bf16.mxu0 0
    %218 = vmatpush1.bf16.msra.mxu0 0
    %219 = vmatprep.subr.bf16.mxu0 0
    %220 = vmatpush1.bf16.msra.mxu0 0
    %221 = vmatprep.subr.bf16.mxu0 0
    %222 = vmatpush1.bf16.msra.mxu0 0
    %223 = vmatprep.subr.bf16.mxu0 0
    %224 = vmatpush1.bf16.msra.mxu0 0
    %225 = vmatprep.subr.bf16.mxu0 0
    %226 = vmatpush1.bf16.msra.mxu0 0
    %227 = vmatprep.subr.bf16.mxu0 0
    %228 = vmatpush1.bf16.msra.mxu0 0
    %229 = vmatprep.subr.bf16.mxu0 0
    %230 = vmatpush1.bf16.msra.mxu0 0
    %231 = vmatprep.subr.bf16.mxu0 0
    %232 = vmatpush1.bf16.msra.mxu0 0
    %233 = vmatprep.mubr.bf16.mxu0 0
    %234 = vmatmul.mubr.bf16.gmra.mrb[0].mxu0 %v156
    %v235 = vpop.f32.mrb[0].mxu0
    %v236 = vadd.f32 %v60, %v235
    %v237 = vpop.f32.mrb[0].mxu0
    %v238 = vadd.f32 %v64, %v237
    %v239 = vpop.f32.mrb[0].mxu0
    %v240 = vadd.f32 %v60, %v239
    %v241 = vpop.f32.mrb[0].mxu0
    %v242 = vadd.f32 %v64, %v241
    %243 = vdwg.mxu0
    %244 = vst [vmem:[#allocation2] sm:$0xff] %v193
    %245 = vst [vmem:[#allocation2 + $0x8] sm:$0xff] %v195
    %246 = vst [vmem:[#allocation2 + $0x10] sm:$0xff] %v236
    %247 = vst [vmem:[#allocation2 + $0x18] sm:$0xff] %v238
    %248 = vst [vmem:[#allocation2 + $0x20] sm:$0xff] %v197
    %249 = vst [vmem:[#allocation2 + $0x28] sm:$0xff] %v199
    %250 = vst [vmem:[#allocation2 + $0x30] sm:$0xff] %v240
    %251 = vst [vmem:[#allocation2 + $0x38] sm:$0xff] %v242
    %v252 = vld [vmem:[#allocation2] sm:$0x3]
    %v253 = vld [vmem:[#allocation2 + $0x8] sm:$0x3]
    %v254 = vld [vmem:[#allocation2 + $0x10] sm:$0x3]
    %v255 = vld [vmem:[#allocation2 + $0x18] sm:$0x3]
    %v256 = vld [vmem:[%s2] sm:$0xff]
    %v257 = vld [vmem:[%s2 + $0x8] sm:$0xff]
    %v258 = vld [vmem:[%s2 + $0x10] sm:$0xff]
    %v259 = vld [vmem:[%s2 + $0x18] sm:$0xff]
    %v260 = vld [vmem:[%s2 + $0x20] sm:$0xff]
    %v261 = vld [vmem:[%s2 + $0x28] sm:$0xff]
    %v262 = vld [vmem:[%s2 + $0x30] sm:$0xff]
    %v263 = vld [vmem:[%s2 + $0x38] sm:$0xff]
    %v264 = vld [vmem:[%s2 + $0x40] sm:$0xff]
    %v265 = vld [vmem:[%s2 + $0x48] sm:$0xff]
    %v266 = vld [vmem:[%s2 + $0x50] sm:$0xff]
    %v267 = vld [vmem:[%s2 + $0x58] sm:$0xff]
    %v268 = vld [vmem:[%s2 + $0x60] sm:$0xff]
    %v269 = vld [vmem:[%s2 + $0x68] sm:$0xff]
    %v270 = vld [vmem:[%s2 + $0x70] sm:$0xff]
    %v271 = vld [vmem:[%s2 + $0x78] sm:$0xff]
    %v272 = vld [vmem:[%s2 + $0x80] sm:$0xff]
    %v273 = vld [vmem:[%s2 + $0x88] sm:$0xff]
    %v274 = vld [vmem:[%s2 + $0x90] sm:$0xff]
    %v275 = vld [vmem:[%s2 + $0x98] sm:$0xff]
    %v276 = vld [vmem:[%s2 + $0xa0] sm:$0xff]
    %v277 = vld [vmem:[%s2 + $0xa8] sm:$0xff]
    %v278 = vld [vmem:[%s2 + $0xb0] sm:$0xff]
    %v279 = vld [vmem:[%s2 + $0xb8] sm:$0xff]
    %v280 = vld [vmem:[%s2 + $0xc0] sm:$0xff]
    %v281 = vld [vmem:[%s2 + $0xc8] sm:$0xff]
    %v282 = vld [vmem:[%s2 + $0xd0] sm:$0xff]
    %v283 = vld [vmem:[%s2 + $0xd8] sm:$0xff]
    %v284 = vld [vmem:[%s2 + $0xe0] sm:$0xff]
    %v285 = vld [vmem:[%s2 + $0xe8] sm:$0xff]
    %v286 = vld [vmem:[%s2 + $0xf0] sm:$0xff]
    %v287 = vld [vmem:[%s2 + $0xf8] sm:$0xff]
    %v320 = vunpack.c.l.b16 %v256
    %v321 = vunpack.c.h.b16 %v256
    %v322 = vunpack.c.l.b16 %v257
    %v323 = vunpack.c.h.b16 %v257
    %v324 = vunpack.c.l.b16 %v258
    %v325 = vunpack.c.h.b16 %v258
    %v326 = vunpack.c.l.b16 %v259
    %v327 = vunpack.c.h.b16 %v259
    %v328 = vunpack.c.l.b16 %v260
    %v329 = vunpack.c.h.b16 %v260
    %v330 = vunpack.c.l.b16 %v261
    %v331 = vunpack.c.h.b16 %v261
    %v332 = vunpack.c.l.b16 %v262
    %v333 = vunpack.c.h.b16 %v262
    %v334 = vunpack.c.l.b16 %v263
    %v335 = vunpack.c.h.b16 %v263
    %v336 = vunpack.c.l.b16 %v264
    %v337 = vunpack.c.h.b16 %v264
    %v338 = vunpack.c.l.b16 %v265
    %v339 = vunpack.c.h.b16 %v265
    %v340 = vunpack.c.l.b16 %v266
    %v341 = vunpack.c.h.b16 %v266
    %v342 = vunpack.c.l.b16 %v267
    %v343 = vunpack.c.h.b16 %v267
    %v344 = vunpack.c.l.b16 %v268
    %v345 = vunpack.c.h.b16 %v268
    %v346 = vunpack.c.l.b16 %v269
    %v347 = vunpack.c.h.b16 %v269
    %v348 = vunpack.c.l.b16 %v270
    %v349 = vunpack.c.h.b16 %v270
    %v350 = vunpack.c.l.b16 %v271
    %v351 = vunpack.c.h.b16 %v271
    %v352 = vunpack.c.l.b16 %v272
    %v353 = vunpack.c.h.b16 %v272
    %v354 = vunpack.c.l.b16 %v273
    %v355 = vunpack.c.h.b16 %v273
    %v356 = vunpack.c.l.b16 %v274
    %v357 = vunpack.c.h.b16 %v274
    %v358 = vunpack.c.l.b16 %v275
    %v359 = vunpack.c.h.b16 %v275
    %v360 = vunpack.c.l.b16 %v276
    %v361 = vunpack.c.h.b16 %v276
    %v362 = vunpack.c.l.b16 %v277
    %v363 = vunpack.c.h.b16 %v277
    %v364 = vunpack.c.l.b16 %v278
    %v365 = vunpack.c.h.b16 %v278
    %v366 = vunpack.c.l.b16 %v279
    %v367 = vunpack.c.h.b16 %v279
    %v368 = vunpack.c.l.b16 %v280
    %v369 = vunpack.c.h.b16 %v280
    %v370 = vunpack.c.l.b16 %v281
    %v371 = vunpack.c.h.b16 %v281
    %v372 = vunpack.c.l.b16 %v282
    %v373 = vunpack.c.h.b16 %v282
    %v374 = vunpack.c.l.b16 %v283
    %v375 = vunpack.c.h.b16 %v283
    %v376 = vunpack.c.l.b16 %v284
    %v377 = vunpack.c.h.b16 %v284
    %v378 = vunpack.c.l.b16 %v285
    %v379 = vunpack.c.h.b16 %v285
    %v380 = vunpack.c.l.b16 %v286
    %v381 = vunpack.c.h.b16 %v286
    %v382 = vunpack.c.l.b16 %v287
    %v383 = vunpack.c.h.b16 %v287
    %v384 = vpack.c.b16 %v324, %v320
    %v385 = vpack.c.b16 %v325, %v321
    %v386 = vpack.c.b16 %v326, %v322
    %v387 = vpack.c.b16 %v327, %v323
    %v388 = vpack.c.b16 %v332, %v328
    %v389 = vpack.c.b16 %v333, %v329
    %v390 = vpack.c.b16 %v334, %v330
    %v391 = vpack.c.b16 %v335, %v331
    %v392 = vpack.c.b16 %v340, %v336
    %v393 = vpack.c.b16 %v341, %v337
    %v394 = vpack.c.b16 %v342, %v338
    %v395 = vpack.c.b16 %v343, %v339
    %v396 = vpack.c.b16 %v348, %v344
    %v397 = vpack.c.b16 %v349, %v345
    %v398 = vpack.c.b16 %v350, %v346
    %v399 = vpack.c.b16 %v351, %v347
    %v400 = vpack.c.b16 %v356, %v352
    %v401 = vpack.c.b16 %v357, %v353
    %v402 = vpack.c.b16 %v358, %v354
    %v403 = vpack.c.b16 %v359, %v355
    %v404 = vpack.c.b16 %v364, %v360
    %v405 = vpack.c.b16 %v365, %v361
    %v406 = vpack.c.b16 %v366, %v362
    %v407 = vpack.c.b16 %v367, %v363
    %v408 = vpack.c.b16 %v372, %v368
    %v409 = vpack.c.b16 %v373, %v369
    %v410 = vpack.c.b16 %v374, %v370
    %v411 = vpack.c.b16 %v375, %v371
    %v412 = vpack.c.b16 %v380, %v376
    %v413 = vpack.c.b16 %v381, %v377
    %v414 = vpack.c.b16 %v382, %v378
    %v415 = vpack.c.b16 %v383, %v379
    %448 = vmatprep.subr.bf16.mxu0 %v385
    %449 = vmatpush1.bf16.msra.mxu0 %v384
    %450 = vmatprep.subr.bf16.mxu0 %v389
    %451 = vmatpush1.bf16.msra.mxu0 %v388
    %452 = vmatprep.subr.bf16.mxu0 %v393
    %453 = vmatpush1.bf16.msra.mxu0 %v392
    %454 = vmatprep.subr.bf16.mxu0 %v397
    %455 = vmatpush1.bf16.msra.mxu0 %v396
    %456 = vmatprep.subr.bf16.mxu0 %v401
    %457 = vmatpush1.bf16.msra.mxu0 %v400
    %458 = vmatprep.subr.bf16.mxu0 %v405
    %459 = vmatpush1.bf16.msra.mxu0 %v404
    %460 = vmatprep.subr.bf16.mxu0 %v409
    %461 = vmatpush1.bf16.msra.mxu0 %v408
    %462 = vmatprep.subr.bf16.mxu0 %v413
    %463 = vmatpush1.bf16.msra.mxu0 %v412
    %464 = vmatprep.subr.bf16.mxu0 0
    %465 = vmatpush1.bf16.msra.mxu0 0
    %466 = vmatprep.subr.bf16.mxu0 0
    %467 = vmatpush1.bf16.msra.mxu0 0
    %468 = vmatprep.subr.bf16.mxu0 0
    %469 = vmatpush1.bf16.msra.mxu0 0
    %470 = vmatprep.subr.bf16.mxu0 0
    %471 = vmatpush1.bf16.msra.mxu0 0
    %472 = vmatprep.subr.bf16.mxu0 0
    %473 = vmatpush1.bf16.msra.mxu0 0
    %474 = vmatprep.subr.bf16.mxu0 0
    %475 = vmatpush1.bf16.msra.mxu0 0
    %476 = vmatprep.subr.bf16.mxu0 0
    %477 = vmatpush1.bf16.msra.mxu0 0
    %478 = vmatprep.subr.bf16.mxu0 0
    %479 = vmatpush1.bf16.msra.mxu0 0
    %480 = vmatprep.mubr.bf16.mxu0 0
    %481 = vmatmul.mubr.bf16.gmra.mrb[0].mxu0 0
    %v482 = vpop.f32.mrb[0].mxu0
    %v483 = vadd.f32 0.0, %v482
    %v484 = vpop.f32.mrb[0].mxu0
    %v485 = vadd.f32 0.0, %v484
    %v486 = vpop.f32.mrb[0].mxu0
    %v487 = vpop.f32.mrb[0].mxu0
    %488 = vdwg.mxu0
    %489 = vmatprep.subr.bf16.mxu0 %v387
    %490 = vmatpush1.bf16.msra.mxu0 %v386
    %491 = vmatprep.subr.bf16.mxu0 %v391
    %492 = vmatpush1.bf16.msra.mxu0 %v390
    %493 = vmatprep.subr.bf16.mxu0 %v395
    %494 = vmatpush1.bf16.msra.mxu0 %v394
    %495 = vmatprep.subr.bf16.mxu0 %v399
    %496 = vmatpush1.bf16.msra.mxu0 %v398
    %497 = vmatprep.subr.bf16.mxu0 %v403
    %498 = vmatpush1.bf16.msra.mxu0 %v402
    %499 = vmatprep.subr.bf16.mxu0 %v407
    %500 = vmatpush1.bf16.msra.mxu0 %v406
    %501 = vmatprep.subr.bf16.mxu0 %v411
    %502 = vmatpush1.bf16.msra.mxu0 %v410
    %503 = vmatprep.subr.bf16.mxu0 %v415
    %504 = vmatpush1.bf16.msra.mxu0 %v414
    %505 = vmatprep.subr.bf16.mxu0 0
    %506 = vmatpush1.bf16.msra.mxu0 0
    %507 = vmatprep.subr.bf16.mxu0 0
    %508 = vmatpush1.bf16.msra.mxu0 0
    %509 = vmatprep.subr.bf16.mxu0 0
    %510 = vmatpush1.bf16.msra.mxu0 0
    %511 = vmatprep.subr.bf16.mxu0 0
    %512 = vmatpush1.bf16.msra.mxu0 0
    %513 = vmatprep.subr.bf16.mxu0 0
    %514 = vmatpush1.bf16.msra.mxu0 0
    %515 = vmatprep.subr.bf16.mxu0 0
    %516 = vmatpush1.bf16.msra.mxu0 0
    %517 = vmatprep.subr.bf16.mxu0 0
    %518 = vmatpush1.bf16.msra.mxu0 0
    %519 = vmatprep.subr.bf16.mxu0 0
    %520 = vmatpush1.bf16.msra.mxu0 0
    %521 = vmatprep.mubr.bf16.mxu0 0
    %522 = vmatmul.mubr.bf16.gmra.mrb[0].mxu0 0
    %v523 = vpop.f32.mrb[0].mxu0
    %v524 = vadd.f32 0.0, %v523
    %v525 = vpop.f32.mrb[0].mxu0
    %v526 = vadd.f32 0.0, %v525
    %v527 = vpop.f32.mrb[0].mxu0
    %v528 = vpop.f32.mrb[0].mxu0
    %529 = vdwg.mxu0
    %v530 = vadd.f32 %v252, %v483
    %v531 = vadd.f32 %v253, %v485
    %v532 = vadd.f32 %v254, %v524
    %v533 = vadd.f32 %v255, %v526
    %v534 = vxor.u32 %v530, 2147483648
    %v535 = vmul.f32 %v534, 1.442695
    %v536 = vpow.pop %v535
    %v537 = vadd.f32 %v536, 1.0
    %v538 = vrcp.pop %v537
    %v539 = vmul.f32 1.0, %v538
    %v540 = vxor.u32 %v531, 2147483648
    %v541 = vmul.f32 %v540, 1.442695
    %v542 = vpow.pop %v541
    %v543 = vadd.f32 %v542, 1.0
    %v544 = vrcp.pop %v543
    %v545 = vmul.f32 1.0, %v544
    %v546 = vtanh.pop %v532
    %v547 = vxor.u32 %v533, 2147483648
    %v548 = vmul.f32 %v547, 1.442695
    %v549 = vpow.pop %v548
    %v550 = vadd.f32 %v549, 1.0
    %v551 = vrcp.pop %v550
    %v552 = vmul.f32 1.0, %v551
    %v553 = vmul.f32 %v545, 0.0
    %v554 = vmul.f32 %v539, %v546
    %v555 = vadd.f32 %v553, %v554
    %v556 = vtanh.pop %v555
    %v557 = vmul.f32 %v552, %v556
    %v558 = vld [vmem:[#allocation2] sm:$0xc]
    %v559 = vld [vmem:[#allocation2 + $0x8] sm:$0xc]
    %v560 = vld [vmem:[#allocation2 + $0x10] sm:$0xc]
    %v561 = vld [vmem:[#allocation2 + $0x18] sm:$0xc]
    %v562 = vpack.c.bf16 %v557, %v557
    %563 = vmatprep.subr.bf16.mxu0 %v385
    %564 = vmatpush1.bf16.msra.mxu0 %v384
    %565 = vmatprep.subr.bf16.mxu0 %v389
    %566 = vmatpush1.bf16.msra.mxu0 %v388
    %567 = vmatprep.subr.bf16.mxu0 %v393
    %568 = vmatpush1.bf16.msra.mxu0 %v392
    %569 = vmatprep.subr.bf16.mxu0 %v397
    %570 = vmatpush1.bf16.msra.mxu0 %v396
    %571 = vmatprep.subr.bf16.mxu0 %v401
    %572 = vmatpush1.bf16.msra.mxu0 %v400
    %573 = vmatprep.subr.bf16.mxu0 %v405
    %574 = vmatpush1.bf16.msra.mxu0 %v404
    %575 = vmatprep.subr.bf16.mxu0 %v409
    %576 = vmatpush1.bf16.msra.mxu0 %v408
    %577 = vmatprep.subr.bf16.mxu0 %v413
    %578 = vmatpush1.bf16.msra.mxu0 %v412
    %579 = vmatprep.subr.bf16.mxu0 0
    %580 = vmatpush1.bf16.msra.mxu0 0
    %581 = vmatprep.subr.bf16.mxu0 0
    %582 = vmatpush1.bf16.msra.mxu0 0
    %583 = vmatprep.subr.bf16.mxu0 0
    %584 = vmatpush1.bf16.msra.mxu0 0
    %585 = vmatprep.subr.bf16.mxu0 0
    %586 = vmatpush1.bf16.msra.mxu0 0
    %587 = vmatprep.subr.bf16.mxu0 0
    %588 = vmatpush1.bf16.msra.mxu0 0
    %589 = vmatprep.subr.bf16.mxu0 0
    %590 = vmatpush1.bf16.msra.mxu0 0
    %591 = vmatprep.subr.bf16.mxu0 0
    %592 = vmatpush1.bf16.msra.mxu0 0
    %593 = vmatprep.subr.bf16.mxu0 0
    %594 = vmatpush1.bf16.msra.mxu0 0
    %595 = vmatprep.mubr.bf16.mxu0 0
    %596 = vmatmul.mubr.bf16.gmra.mrb[0].mxu0 %v562
    %v597 = vpop.f32.mrb[0].mxu0
    %v598 = vadd.f32 0.0, %v597
    %v599 = vpop.f32.mrb[0].mxu0
    %v600 = vadd.f32 0.0, %v599
    %v601 = vpop.f32.mrb[0].mxu0
    %v602 = vpop.f32.mrb[0].mxu0
    %603 = vdwg.mxu0
    %604 = vmatprep.subr.bf16.mxu0 %v387
    %605 = vmatpush1.bf16.msra.mxu0 %v386
    %606 = vmatprep.subr.bf16.mxu0 %v391
    %607 = vmatpush1.bf16.msra.mxu0 %v390
    %608 = vmatprep.subr.bf16.mxu0 %v395
    %609 = vmatpush1.bf16.msra.mxu0 %v394
    %610 = vmatprep.subr.bf16.mxu0 %v399
    %611 = vmatpush1.bf16.msra.mxu0 %v398
    %612 = vmatprep.subr.bf16.mxu0 %v403
    %613 = vmatpush1.bf16.msra.mxu0 %v402
    %614 = vmatprep.subr.bf16.mxu0 %v407
    %615 = vmatpush1.bf16.msra.mxu0 %v406
    %616 = vmatprep.subr.bf16.mxu0 %v411
    %617 = vmatpush1.bf16.msra.mxu0 %v410
    %618 = vmatprep.subr.bf16.mxu0 %v415
    %619 = vmatpush1.bf16.msra.mxu0 %v414
    %620 = vmatprep.subr.bf16.mxu0 0
    %621 = vmatpush1.bf16.msra.mxu0 0
    %622 = vmatprep.subr.bf16.mxu0 0
    %623 = vmatpush1.bf16.msra.mxu0 0
    %624 = vmatprep.subr.bf16.mxu0 0
    %625 = vmatpush1.bf16.msra.mxu0 0
    %626 = vmatprep.subr.bf16.mxu0 0
    %627 = vmatpush1.bf16.msra.mxu0 0
    %628 = vmatprep.subr.bf16.mxu0 0
    %629 = vmatpush1.bf16.msra.mxu0 0
    %630 = vmatprep.subr.bf16.mxu0 0
    %631 = vmatpush1.bf16.msra.mxu0 0
    %632 = vmatprep.subr.bf16.mxu0 0
    %633 = vmatpush1.bf16.msra.mxu0 0
    %634 = vmatprep.subr.bf16.mxu0 0
    %635 = vmatpush1.bf16.msra.mxu0 0
    %636 = vmatprep.mubr.bf16.mxu0 0
    %637 = vmatmul.mubr.bf16.gmra.mrb[0].mxu0 %v562
    %v638 = vpop.f32.mrb[0].mxu0
    %v639 = vadd.f32 0.0, %v638
    %v640 = vpop.f32.mrb[0].mxu0
    %v641 = vadd.f32 0.0, %v640
    %v642 = vpop.f32.mrb[0].mxu0
    %v643 = vpop.f32.mrb[0].mxu0
    %644 = vdwg.mxu0
    %v649 = vrot.slane %v598, 6
    %v650 = vrot.slane %v600, 6
    %v651 = vrot.slane %v639, 6
    %v652 = vrot.slane %v641, 6
    %v657 = vadd.f32 %v558, %v649
    %v658 = vadd.f32 %v559, %v650
    %v659 = vadd.f32 %v560, %v651
    %v660 = vadd.f32 %v561, %v652
    %v661 = vxor.u32 %v657, 2147483648
    %v662 = vmul.f32 %v661, 1.442695
    %v663 = vpow.pop %v662
    %v664 = vadd.f32 %v663, 1.0
    %v665 = vrcp.pop %v664
    %v666 = vmul.f32 1.0, %v665
    %v667 = vxor.u32 %v658, 2147483648
    %v668 = vmul.f32 %v667, 1.442695
    %v669 = vpow.pop %v668
    %v670 = vadd.f32 %v669, 1.0
    %v671 = vrcp.pop %v670
    %v672 = vmul.f32 1.0, %v671
    %v673 = vtanh.pop %v659
    %v674 = vxor.u32 %v660, 2147483648
    %v675 = vmul.f32 %v674, 1.442695
    %v676 = vpow.pop %v675
    %v677 = vadd.f32 %v676, 1.0
    %v678 = vrcp.pop %v677
    %v679 = vmul.f32 1.0, %v678
    %v681 = vrot.slane %v555, 6
    %v683 = vmul.f32 %v672, %v681
    %v684 = vmul.f32 %v666, %v673
    %v685 = vadd.f32 %v683, %v684
    %v686 = vtanh.pop %v685
    %v687 = vmul.f32 %v679, %v686
    %v688 = vld [vmem:[#allocation2] sm:$0x30]
    %v689 = vld [vmem:[#allocation2 + $0x8] sm:$0x30]
    %v690 = vld [vmem:[#allocation2 + $0x10] sm:$0x30]
    %v691 = vld [vmem:[#allocation2 + $0x18] sm:$0x30]
    %v692 = vpack.c.bf16 %v687, %v687
    %v694 = vrot.slane %v692, 1
    %696 = vmatprep.subr.bf16.mxu0 %v385
    %697 = vmatpush1.bf16.msra.mxu0 %v384
    %698 = vmatprep.subr.bf16.mxu0 %v389
    %699 = vmatpush1.bf16.msra.mxu0 %v388
    %700 = vmatprep.subr.bf16.mxu0 %v393
    %701 = vmatpush1.bf16.msra.mxu0 %v392
    %702 = vmatprep.subr.bf16.mxu0 %v397
    %703 = vmatpush1.bf16.msra.mxu0 %v396
    %704 = vmatprep.subr.bf16.mxu0 %v401
    %705 = vmatpush1.bf16.msra.mxu0 %v400
    %706 = vmatprep.subr.bf16.mxu0 %v405
    %707 = vmatpush1.bf16.msra.mxu0 %v404
    %708 = vmatprep.subr.bf16.mxu0 %v409
    %709 = vmatpush1.bf16.msra.mxu0 %v408
    %710 = vmatprep.subr.bf16.mxu0 %v413
    %711 = vmatpush1.bf16.msra.mxu0 %v412
    %712 = vmatprep.subr.bf16.mxu0 0
    %713 = vmatpush1.bf16.msra.mxu0 0
    %714 = vmatprep.subr.bf16.mxu0 0
    %715 = vmatpush1.bf16.msra.mxu0 0
    %716 = vmatprep.subr.bf16.mxu0 0
    %717 = vmatpush1.bf16.msra.mxu0 0
    %718 = vmatprep.subr.bf16.mxu0 0
    %719 = vmatpush1.bf16.msra.mxu0 0
    %720 = vmatprep.subr.bf16.mxu0 0
    %721 = vmatpush1.bf16.msra.mxu0 0
    %722 = vmatprep.subr.bf16.mxu0 0
    %723 = vmatpush1.bf16.msra.mxu0 0
    %724 = vmatprep.subr.bf16.mxu0 0
    %725 = vmatpush1.bf16.msra.mxu0 0
    %726 = vmatprep.subr.bf16.mxu0 0
    %727 = vmatpush1.bf16.msra.mxu0 0
    %728 = vmatprep.mubr.bf16.mxu0 0
    %729 = vmatmul.mubr.bf16.gmra.mrb[0].mxu0 %v694
    %v730 = vpop.f32.mrb[0].mxu0
    %v731 = vadd.f32 0.0, %v730
    %v732 = vpop.f32.mrb[0].mxu0
    %v733 = vadd.f32 0.0, %v732
    %v734 = vpop.f32.mrb[0].mxu0
    %v735 = vpop.f32.mrb[0].mxu0
    %736 = vdwg.mxu0
    %737 = vmatprep.subr.bf16.mxu0 %v387
    %738 = vmatpush1.bf16.msra.mxu0 %v386
    %739 = vmatprep.subr.bf16.mxu0 %v391
    %740 = vmatpush1.bf16.msra.mxu0 %v390
    %741 = vmatprep.subr.bf16.mxu0 %v395
    %742 = vmatpush1.bf16.msra.mxu0 %v394
    %743 = vmatprep.subr.bf16.mxu0 %v399
    %744 = vmatpush1.bf16.msra.mxu0 %v398
    %745 = vmatprep.subr.bf16.mxu0 %v403
    %746 = vmatpush1.bf16.msra.mxu0 %v402
    %747 = vmatprep.subr.bf16.mxu0 %v407
    %748 = vmatpush1.bf16.msra.mxu0 %v406
    %749 = vmatprep.subr.bf16.mxu0 %v411
    %750 = vmatpush1.bf16.msra.mxu0 %v410
    %751 = vmatprep.subr.bf16.mxu0 %v415
    %752 = vmatpush1.bf16.msra.mxu0 %v414
    %753 = vmatprep.subr.bf16.mxu0 0
    %754 = vmatpush1.bf16.msra.mxu0 0
    %755 = vmatprep.subr.bf16.mxu0 0
    %756 = vmatpush1.bf16.msra.mxu0 0
    %757 = vmatprep.subr.bf16.mxu0 0
    %758 = vmatpush1.bf16.msra.mxu0 0
    %759 = vmatprep.subr.bf16.mxu0 0
    %760 = vmatpush1.bf16.msra.mxu0 0
    %761 = vmatprep.subr.bf16.mxu0 0
    %762 = vmatpush1.bf16.msra.mxu0 0
    %763 = vmatprep.subr.bf16.mxu0 0
    %764 = vmatpush1.bf16.msra.mxu0 0
    %765 = vmatprep.subr.bf16.mxu0 0
    %766 = vmatpush1.bf16.msra.mxu0 0
    %767 = vmatprep.subr.bf16.mxu0 0
    %768 = vmatpush1.bf16.msra.mxu0 0
    %769 = vmatprep.mubr.bf16.mxu0 0
    %770 = vmatmul.mubr.bf16.gmra.mrb[0].mxu0 %v694
    %v771 = vpop.f32.mrb[0].mxu0
    %v772 = vadd.f32 0.0, %v771
    %v773 = vpop.f32.mrb[0].mxu0
    %v774 = vadd.f32 0.0, %v773
    %v775 = vpop.f32.mrb[0].mxu0
    %v776 = vpop.f32.mrb[0].mxu0
    %777 = vdwg.mxu0
    %v782 = vrot.slane %v731, 4
    %v783 = vrot.slane %v733, 4
    %v784 = vrot.slane %v772, 4
    %v785 = vrot.slane %v774, 4
    %v790 = vadd.f32 %v688, %v782
    %v791 = vadd.f32 %v689, %v783
    %v792 = vadd.f32 %v690, %v784
    %v793 = vadd.f32 %v691, %v785
    %v794 = vxor.u32 %v790, 2147483648
    %v795 = vmul.f32 %v794, 1.442695
    %v796 = vpow.pop %v795
    %v797 = vadd.f32 %v796, 1.0
    %v798 = vrcp.pop %v797
    %v799 = vmul.f32 1.0, %v798
    %v800 = vxor.u32 %v791, 2147483648
    %v801 = vmul.f32 %v800, 1.442695
    %v802 = vpow.pop %v801
    %v803 = vadd.f32 %v802, 1.0
    %v804 = vrcp.pop %v803
    %v805 = vmul.f32 1.0, %v804
    %v806 = vtanh.pop %v792
    %v807 = vxor.u32 %v793, 2147483648
    %v808 = vmul.f32 %v807, 1.442695
    %v809 = vpow.pop %v808
    %v810 = vadd.f32 %v809, 1.0
    %v811 = vrcp.pop %v810
    %v812 = vmul.f32 1.0, %v811
    %v814 = vrot.slane %v685, 6
    %v816 = vmul.f32 %v805, %v814
    %v817 = vmul.f32 %v799, %v806
    %v818 = vadd.f32 %v816, %v817
    %v819 = vtanh.pop %v818
    %v820 = vmul.f32 %v812, %v819
    %v821 = vld [vmem:[#allocation2] sm:$0xc0]
    %v822 = vld [vmem:[#allocation2 + $0x8] sm:$0xc0]
    %v823 = vld [vmem:[#allocation2 + $0x10] sm:$0xc0]
    %v824 = vld [vmem:[#allocation2 + $0x18] sm:$0xc0]
    %v825 = vpack.c.bf16 %v820, %v820
    %v827 = vrot.slane %v825, 2
    %829 = vmatprep.subr.bf16.mxu0 %v385
    %830 = vmatpush1.bf16.msra.mxu0 %v384
    %831 = vmatprep.subr.bf16.mxu0 %v389
    %832 = vmatpush1.bf16.msra.mxu0 %v388
    %833 = vmatprep.subr.bf16.mxu0 %v393
    %834 = vmatpush1.bf16.msra.mxu0 %v392
    %835 = vmatprep.subr.bf16.mxu0 %v397
    %836 = vmatpush1.bf16.msra.mxu0 %v396
    %837 = vmatprep.subr.bf16.mxu0 %v401
    %838 = vmatpush1.bf16.msra.mxu0 %v400
    %839 = vmatprep.subr.bf16.mxu0 %v405
    %840 = vmatpush1.bf16.msra.mxu0 %v404
    %841 = vmatprep.subr.bf16.mxu0 %v409
    %842 = vmatpush1.bf16.msra.mxu0 %v408
    %843 = vmatprep.subr.bf16.mxu0 %v413
    %844 = vmatpush1.bf16.msra.mxu0 %v412
    %845 = vmatprep.subr.bf16.mxu0 0
    %846 = vmatpush1.bf16.msra.mxu0 0
    %847 = vmatprep.subr.bf16.mxu0 0
    %848 = vmatpush1.bf16.msra.mxu0 0
    %849 = vmatprep.subr.bf16.mxu0 0
    %850 = vmatpush1.bf16.msra.mxu0 0
    %851 = vmatprep.subr.bf16.mxu0 0
    %852 = vmatpush1.bf16.msra.mxu0 0
    %853 = vmatprep.subr.bf16.mxu0 0
    %854 = vmatpush1.bf16.msra.mxu0 0
    %855 = vmatprep.subr.bf16.mxu0 0
    %856 = vmatpush1.bf16.msra.mxu0 0
    %857 = vmatprep.subr.bf16.mxu0 0
    %858 = vmatpush1.bf16.msra.mxu0 0
    %859 = vmatprep.subr.bf16.mxu0 0
    %860 = vmatpush1.bf16.msra.mxu0 0
    %861 = vmatprep.mubr.bf16.mxu0 0
    %862 = vmatmul.mubr.bf16.gmra.mrb[0].mxu0 %v827
    %v863 = vpop.f32.mrb[0].mxu0
    %v864 = vadd.f32 0.0, %v863
    %v865 = vpop.f32.mrb[0].mxu0
    %v866 = vadd.f32 0.0, %v865
    %v867 = vpop.f32.mrb[0].mxu0
    %v868 = vpop.f32.mrb[0].mxu0
    %869 = vdwg.mxu0
    %870 = vmatprep.subr.bf16.mxu0 %v387
    %871 = vmatpush1.bf16.msra.mxu0 %v386
    %872 = vmatprep.subr.bf16.mxu0 %v391
    %873 = vmatpush1.bf16.msra.mxu0 %v390
    %874 = vmatprep.subr.bf16.mxu0 %v395
    %875 = vmatpush1.bf16.msra.mxu0 %v394
    %876 = vmatprep.subr.bf16.mxu0 %v399
    %877 = vmatpush1.bf16.msra.mxu0 %v398
    %878 = vmatprep.subr.bf16.mxu0 %v403
    %879 = vmatpush1.bf16.msra.mxu0 %v402
    %880 = vmatprep.subr.bf16.mxu0 %v407
    %881 = vmatpush1.bf16.msra.mxu0 %v406
    %882 = vmatprep.subr.bf16.mxu0 %v411
    %883 = vmatpush1.bf16.msra.mxu0 %v410
    %884 = vmatprep.subr.bf16.mxu0 %v415
    %885 = vmatpush1.bf16.msra.mxu0 %v414
    %886 = vmatprep.subr.bf16.mxu0 0
    %887 = vmatpush1.bf16.msra.mxu0 0
    %888 = vmatprep.subr.bf16.mxu0 0
    %889 = vmatpush1.bf16.msra.mxu0 0
    %890 = vmatprep.subr.bf16.mxu0 0
    %891 = vmatpush1.bf16.msra.mxu0 0
    %892 = vmatprep.subr.bf16.mxu0 0
    %893 = vmatpush1.bf16.msra.mxu0 0
    %894 = vmatprep.subr.bf16.mxu0 0
    %895 = vmatpush1.bf16.msra.mxu0 0
    %896 = vmatprep.subr.bf16.mxu0 0
    %897 = vmatpush1.bf16.msra.mxu0 0
    %898 = vmatprep.subr.bf16.mxu0 0
    %899 = vmatpush1.bf16.msra.mxu0 0
    %900 = vmatprep.subr.bf16.mxu0 0
    %901 = vmatpush1.bf16.msra.mxu0 0
    %902 = vmatprep.mubr.bf16.mxu0 0
    %903 = vmatmul.mubr.bf16.gmra.mrb[0].mxu0 %v827
    %v904 = vpop.f32.mrb[0].mxu0
    %v905 = vadd.f32 0.0, %v904
    %v906 = vpop.f32.mrb[0].mxu0
    %v907 = vadd.f32 0.0, %v906
    %v908 = vpop.f32.mrb[0].mxu0
    %v909 = vpop.f32.mrb[0].mxu0
    %910 = vdwg.mxu0
    %v915 = vrot.slane %v864, 2
    %v916 = vrot.slane %v866, 2
    %v917 = vrot.slane %v905, 2
    %v918 = vrot.slane %v907, 2
    %v923 = vadd.f32 %v821, %v915
    %v924 = vadd.f32 %v822, %v916
    %v925 = vadd.f32 %v823, %v917
    %v926 = vadd.f32 %v824, %v918
    %v927 = vxor.u32 %v923, 2147483648
    %v928 = vmul.f32 %v927, 1.442695
    %v929 = vpow.pop %v928
    %v930 = vadd.f32 %v929, 1.0
    %v931 = vrcp.pop %v930
    %v932 = vmul.f32 1.0, %v931
    %v933 = vxor.u32 %v924, 2147483648
    %v934 = vmul.f32 %v933, 1.442695
    %v935 = vpow.pop %v934
    %v936 = vadd.f32 %v935, 1.0
    %v937 = vrcp.pop %v936
    %v938 = vmul.f32 1.0, %v937
    %v939 = vtanh.pop %v925
    %v940 = vxor.u32 %v926, 2147483648
    %v941 = vmul.f32 %v940, 1.442695
    %v942 = vpow.pop %v941
    %v943 = vadd.f32 %v942, 1.0
    %v944 = vrcp.pop %v943
    %v945 = vmul.f32 1.0, %v944
    %v947 = vrot.slane %v818, 6
    %v949 = vmul.f32 %v938, %v947
    %v950 = vmul.f32 %v932, %v939
    %v951 = vadd.f32 %v949, %v950
    %v952 = vtanh.pop %v951
    %v953 = vmul.f32 %v945, %v952
    %v954 = vld [vmem:[#allocation2 + $0x20] sm:$0x3]
    %v955 = vld [vmem:[#allocation2 + $0x28] sm:$0x3]
    %v956 = vld [vmem:[#allocation2 + $0x30] sm:$0x3]
    %v957 = vld [vmem:[#allocation2 + $0x38] sm:$0x3]
    %v958 = vpack.c.bf16 %v953, %v953
    %v960 = vrot.slane %v958, 3
    %962 = vmatprep.subr.bf16.mxu0 %v385
    %963 = vmatpush1.bf16.msra.mxu0 %v384
    %964 = vmatprep.subr.bf16.mxu0 %v389
    %965 = vmatpush1.bf16.msra.mxu0 %v388
    %966 = vmatprep.subr.bf16.mxu0 %v393
    %967 = vmatpush1.bf16.msra.mxu0 %v392
    %968 = vmatprep.subr.bf16.mxu0 %v397
    %969 = vmatpush1.bf16.msra.mxu0 %v396
    %970 = vmatprep.subr.bf16.mxu0 %v401
    %971 = vmatpush1.bf16.msra.mxu0 %v400
    %972 = vmatprep.subr.bf16.mxu0 %v405
    %973 = vmatpush1.bf16.msra.mxu0 %v404
    %974 = vmatprep.subr.bf16.mxu0 %v409
    %975 = vmatpush1.bf16.msra.mxu0 %v408
    %976 = vmatprep.subr.bf16.mxu0 %v413
    %977 = vmatpush1.bf16.msra.mxu0 %v412
    %978 = vmatprep.subr.bf16.mxu0 0
    %979 = vmatpush1.bf16.msra.mxu0 0
    %980 = vmatprep.subr.bf16.mxu0 0
    %981 = vmatpush1.bf16.msra.mxu0 0
    %982 = vmatprep.subr.bf16.mxu0 0
    %983 = vmatpush1.bf16.msra.mxu0 0
    %984 = vmatprep.subr.bf16.mxu0 0
    %985 = vmatpush1.bf16.msra.mxu0 0
    %986 = vmatprep.subr.bf16.mxu0 0
    %987 = vmatpush1.bf16.msra.mxu0 0
    %988 = vmatprep.subr.bf16.mxu0 0
    %989 = vmatpush1.bf16.msra.mxu0 0
    %990 = vmatprep.subr.bf16.mxu0 0
    %991 = vmatpush1.bf16.msra.mxu0 0
    %992 = vmatprep.subr.bf16.mxu0 0
    %993 = vmatpush1.bf16.msra.mxu0 0
    %994 = vmatprep.mubr.bf16.mxu0 0
    %995 = vmatmul.mubr.bf16.gmra.mrb[0].mxu0 %v960
    %v996 = vpop.f32.mrb[0].mxu0
    %v997 = vadd.f32 0.0, %v996
    %v998 = vpop.f32.mrb[0].mxu0
    %v999 = vadd.f32 0.0, %v998
    %v1000 = vpop.f32.mrb[0].mxu0
    %v1001 = vpop.f32.mrb[0].mxu0
    %1002 = vdwg.mxu0
    %1003 = vmatprep.subr.bf16.mxu0 %v387
    %1004 = vmatpush1.bf16.msra.mxu0 %v386
    %1005 = vmatprep.subr.bf16.mxu0 %v391
    %1006 = vmatpush1.bf16.msra.mxu0 %v390
    %1007 = vmatprep.subr.bf16.mxu0 %v395
    %1008 = vmatpush1.bf16.msra.mxu0 %v394
    %1009 = vmatprep.subr.bf16.mxu0 %v399
    %1010 = vmatpush1.bf16.msra.mxu0 %v398
    %1011 = vmatprep.subr.bf16.mxu0 %v403
    %1012 = vmatpush1.bf16.msra.mxu0 %v402
    %1013 = vmatprep.subr.bf16.mxu0 %v407
    %1014 = vmatpush1.bf16.msra.mxu0 %v406
    %1015 = vmatprep.subr.bf16.mxu0 %v411
    %1016 = vmatpush1.bf16.msra.mxu0 %v410
    %1017 = vmatprep.subr.bf16.mxu0 %v415
    %1018 = vmatpush1.bf16.msra.mxu0 %v414
    %1019 = vmatprep.subr.bf16.mxu0 0
    %1020 = vmatpush1.bf16.msra.mxu0 0
    %1021 = vmatprep.subr.bf16.mxu0 0
    %1022 = vmatpush1.bf16.msra.mxu0 0
    %1023 = vmatprep.subr.bf16.mxu0 0
    %1024 = vmatpush1.bf16.msra.mxu0 0
    %1025 = vmatprep.subr.bf16.mxu0 0
    %1026 = vmatpush1.bf16.msra.mxu0 0
    %1027 = vmatprep.subr.bf16.mxu0 0
    %1028 = vmatpush1.bf16.msra.mxu0 0
    %1029 = vmatprep.subr.bf16.mxu0 0
    %1030 = vmatpush1.bf16.msra.mxu0 0
    %1031 = vmatprep.subr.bf16.mxu0 0
    %1032 = vmatpush1.bf16.msra.mxu0 0
    %1033 = vmatprep.subr.bf16.mxu0 0
    %1034 = vmatpush1.bf16.msra.mxu0 0
    %1035 = vmatprep.mubr.bf16.mxu0 0
    %1036 = vmatmul.mubr.bf16.gmra.mrb[0].mxu0 %v960
    %v1037 = vpop.f32.mrb[0].mxu0
    %v1038 = vadd.f32 0.0, %v1037
    %v1039 = vpop.f32.mrb[0].mxu0
    %v1040 = vadd.f32 0.0, %v1039
    %v1041 = vpop.f32.mrb[0].mxu0
    %v1042 = vpop.f32.mrb[0].mxu0
    %1043 = vdwg.mxu0
    %v1044 = vadd.f32 %v954, %v997
    %v1045 = vadd.f32 %v955, %v999
    %v1046 = vadd.f32 %v956, %v1038
    %v1047 = vadd.f32 %v957, %v1040
    %v1048 = vxor.u32 %v1044, 2147483648
    %v1049 = vmul.f32 %v1048, 1.442695
    %v1050 = vpow.pop %v1049
    %v1051 = vadd.f32 %v1050, 1.0
    %v1052 = vrcp.pop %v1051
    %v1053 = vmul.f32 1.0, %v1052
    %v1054 = vxor.u32 %v1045, 2147483648
    %v1055 = vmul.f32 %v1054, 1.442695
    %v1056 = vpow.pop %v1055
    %v1057 = vadd.f32 %v1056, 1.0
    %v1058 = vrcp.pop %v1057
    %v1059 = vmul.f32 1.0, %v1058
    %v1060 = vtanh.pop %v1046
    %v1061 = vxor.u32 %v1047, 2147483648
    %v1062 = vmul.f32 %v1061, 1.442695
    %v1063 = vpow.pop %v1062
    %v1064 = vadd.f32 %v1063, 1.0
    %v1065 = vrcp.pop %v1064
    %v1066 = vmul.f32 1.0, %v1065
    %v1068 = vrot.slane %v951, 6
    %v1070 = vmul.f32 %v1059, %v1068
    %v1071 = vmul.f32 %v1053, %v1060
    %v1072 = vadd.f32 %v1070, %v1071
    %v1073 = vtanh.pop %v1072
    %v1074 = vmul.f32 %v1066, %v1073
    %v1075 = vld [vmem:[#allocation2 + $0x20] sm:$0xc]
    %v1076 = vld [vmem:[#allocation2 + $0x28] sm:$0xc]
    %v1077 = vld [vmem:[#allocation2 + $0x30] sm:$0xc]
    %v1078 = vld [vmem:[#allocation2 + $0x38] sm:$0xc]
    %v1079 = vpack.c.bf16 %v1074, %v1074
    %1080 = vmatprep.subr.bf16.mxu0 %v385
    %1081 = vmatpush1.bf16.msra.mxu0 %v384
    %1082 = vmatprep.subr.bf16.mxu0 %v389
    %1083 = vmatpush1.bf16.msra.mxu0 %v388
    %1084 = vmatprep.subr.bf16.mxu0 %v393
    %1085 = vmatpush1.bf16.msra.mxu0 %v392
    %1086 = vmatprep.subr.bf16.mxu0 %v397
    %1087 = vmatpush1.bf16.msra.mxu0 %v396
    %1088 = vmatprep.subr.bf16.mxu0 %v401
    %1089 = vmatpush1.bf16.msra.mxu0 %v400
    %1090 = vmatprep.subr.bf16.mxu0 %v405
    %1091 = vmatpush1.bf16.msra.mxu0 %v404
    %1092 = vmatprep.subr.bf16.mxu0 %v409
    %1093 = vmatpush1.bf16.msra.mxu0 %v408
    %1094 = vmatprep.subr.bf16.mxu0 %v413
    %1095 = vmatpush1.bf16.msra.mxu0 %v412
    %1096 = vmatprep.subr.bf16.mxu0 0
    %1097 = vmatpush1.bf16.msra.mxu0 0
    %1098 = vmatprep.subr.bf16.mxu0 0
    %1099 = vmatpush1.bf16.msra.mxu0 0
    %1100 = vmatprep.subr.bf16.mxu0 0
    %1101 = vmatpush1.bf16.msra.mxu0 0
    %1102 = vmatprep.subr.bf16.mxu0 0
    %1103 = vmatpush1.bf16.msra.mxu0 0
    %1104 = vmatprep.subr.bf16.mxu0 0
    %1105 = vmatpush1.bf16.msra.mxu0 0
    %1106 = vmatprep.subr.bf16.mxu0 0
    %1107 = vmatpush1.bf16.msra.mxu0 0
    %1108 = vmatprep.subr.bf16.mxu0 0
    %1109 = vmatpush1.bf16.msra.mxu0 0
    %1110 = vmatprep.subr.bf16.mxu0 0
    %1111 = vmatpush1.bf16.msra.mxu0 0
    %1112 = vmatprep.mubr.bf16.mxu0 0
    %1113 = vmatmul.mubr.bf16.gmra.mrb[0].mxu0 %v1079
    %v1114 = vpop.f32.mrb[0].mxu0
    %v1115 = vadd.f32 0.0, %v1114
    %v1116 = vpop.f32.mrb[0].mxu0
    %v1117 = vadd.f32 0.0, %v1116
    %v1118 = vpop.f32.mrb[0].mxu0
    %v1119 = vpop.f32.mrb[0].mxu0
    %1120 = vdwg.mxu0
    %1121 = vmatprep.subr.bf16.mxu0 %v387
    %1122 = vmatpush1.bf16.msra.mxu0 %v386
    %1123 = vmatprep.subr.bf16.mxu0 %v391
    %1124 = vmatpush1.bf16.msra.mxu0 %v390
    %1125 = vmatprep.subr.bf16.mxu0 %v395
    %1126 = vmatpush1.bf16.msra.mxu0 %v394
    %1127 = vmatprep.subr.bf16.mxu0 %v399
    %1128 = vmatpush1.bf16.msra.mxu0 %v398
    %1129 = vmatprep.subr.bf16.mxu0 %v403
    %1130 = vmatpush1.bf16.msra.mxu0 %v402
    %1131 = vmatprep.subr.bf16.mxu0 %v407
    %1132 = vmatpush1.bf16.msra.mxu0 %v406
    %1133 = vmatprep.subr.bf16.mxu0 %v411
    %1134 = vmatpush1.bf16.msra.mxu0 %v410
    %1135 = vmatprep.subr.bf16.mxu0 %v415
    %1136 = vmatpush1.bf16.msra.mxu0 %v414
    %1137 = vmatprep.subr.bf16.mxu0 0
    %1138 = vmatpush1.bf16.msra.mxu0 0
    %1139 = vmatprep.subr.bf16.mxu0 0
    %1140 = vmatpush1.bf16.msra.mxu0 0
    %1141 = vmatprep.subr.bf16.mxu0 0
    %1142 = vmatpush1.bf16.msra.mxu0 0
    %1143 = vmatprep.subr.bf16.mxu0 0
    %1144 = vmatpush1.bf16.msra.mxu0 0
    %1145 = vmatprep.subr.bf16.mxu0 0
    %1146 = vmatpush1.bf16.msra.mxu0 0
    %1147 = vmatprep.subr.bf16.mxu0 0
    %1148 = vmatpush1.bf16.msra.mxu0 0
    %1149 = vmatprep.subr.bf16.mxu0 0
    %1150 = vmatpush1.bf16.msra.mxu0 0
    %1151 = vmatprep.subr.bf16.mxu0 0
    %1152 = vmatpush1.bf16.msra.mxu0 0
    %1153 = vmatprep.mubr.bf16.mxu0 0
    %1154 = vmatmul.mubr.bf16.gmra.mrb[0].mxu0 %v1079
    %v1155 = vpop.f32.mrb[0].mxu0
    %v1156 = vadd.f32 0.0, %v1155
    %v1157 = vpop.f32.mrb[0].mxu0
    %v1158 = vadd.f32 0.0, %v1157
    %v1159 = vpop.f32.mrb[0].mxu0
    %v1160 = vpop.f32.mrb[0].mxu0
    %1161 = vdwg.mxu0
    %v1166 = vrot.slane %v1115, 6
    %v1167 = vrot.slane %v1117, 6
    %v1168 = vrot.slane %v1156, 6
    %v1169 = vrot.slane %v1158, 6
    %v1174 = vadd.f32 %v1075, %v1166
    %v1175 = vadd.f32 %v1076, %v1167
    %v1176 = vadd.f32 %v1077, %v1168
    %v1177 = vadd.f32 %v1078, %v1169
    %v1178 = vxor.u32 %v1174, 2147483648
    %v1179 = vmul.f32 %v1178, 1.442695
    %v1180 = vpow.pop %v1179
    %v1181 = vadd.f32 %v1180, 1.0
    %v1182 = vrcp.pop %v1181
    %v1183 = vmul.f32 1.0, %v1182
    %v1184 = vxor.u32 %v1175, 2147483648
    %v1185 = vmul.f32 %v1184, 1.442695
    %v1186 = vpow.pop %v1185
    %v1187 = vadd.f32 %v1186, 1.0
    %v1188 = vrcp.pop %v1187
    %v1189 = vmul.f32 1.0, %v1188
    %v1190 = vtanh.pop %v1176
    %v1191 = vxor.u32 %v1177, 2147483648
    %v1192 = vmul.f32 %v1191, 1.442695
    %v1193 = vpow.pop %v1192
    %v1194 = vadd.f32 %v1193, 1.0
    %v1195 = vrcp.pop %v1194
    %v1196 = vmul.f32 1.0, %v1195
    %v1198 = vrot.slane %v1072, 6
    %v1200 = vmul.f32 %v1189, %v1198
    %v1201 = vmul.f32 %v1183, %v1190
    %v1202 = vadd.f32 %v1200, %v1201
    %v1203 = vtanh.pop %v1202
    %v1204 = vmul.f32 %v1196, %v1203
    %v1205 = vld [vmem:[#allocation2 + $0x20] sm:$0x30]
    %v1206 = vld [vmem:[#allocation2 + $0x28] sm:$0x30]
    %v1207 = vld [vmem:[#allocation2 + $0x30] sm:$0x30]
    %v1208 = vld [vmem:[#allocation2 + $0x38] sm:$0x30]
    %v1209 = vpack.c.bf16 %v1204, %v1204
    %v1211 = vrot.slane %v1209, 1
    %1213 = vmatprep.subr.bf16.mxu0 %v385
    %1214 = vmatpush1.bf16.msra.mxu0 %v384
    %1215 = vmatprep.subr.bf16.mxu0 %v389
    %1216 = vmatpush1.bf16.msra.mxu0 %v388
    %1217 = vmatprep.subr.bf16.mxu0 %v393
    %1218 = vmatpush1.bf16.msra.mxu0 %v392
    %1219 = vmatprep.subr.bf16.mxu0 %v397
    %1220 = vmatpush1.bf16.msra.mxu0 %v396
    %1221 = vmatprep.subr.bf16.mxu0 %v401
    %1222 = vmatpush1.bf16.msra.mxu0 %v400
    %1223 = vmatprep.subr.bf16.mxu0 %v405
    %1224 = vmatpush1.bf16.msra.mxu0 %v404
    %1225 = vmatprep.subr.bf16.mxu0 %v409
    %1226 = vmatpush1.bf16.msra.mxu0 %v408
    %1227 = vmatprep.subr.bf16.mxu0 %v413
    %1228 = vmatpush1.bf16.msra.mxu0 %v412
    %1229 = vmatprep.subr.bf16.mxu0 0
    %1230 = vmatpush1.bf16.msra.mxu0 0
    %1231 = vmatprep.subr.bf16.mxu0 0
    %1232 = vmatpush1.bf16.msra.mxu0 0
    %1233 = vmatprep.subr.bf16.mxu0 0
    %1234 = vmatpush1.bf16.msra.mxu0 0
    %1235 = vmatprep.subr.bf16.mxu0 0
    %1236 = vmatpush1.bf16.msra.mxu0 0
    %1237 = vmatprep.subr.bf16.mxu0 0
    %1238 = vmatpush1.bf16.msra.mxu0 0
    %1239 = vmatprep.subr.bf16.mxu0 0
    %1240 = vmatpush1.bf16.msra.mxu0 0
    %1241 = vmatprep.subr.bf16.mxu0 0
    %1242 = vmatpush1.bf16.msra.mxu0 0
    %1243 = vmatprep.subr.bf16.mxu0 0
    %1244 = vmatpush1.bf16.msra.mxu0 0
    %1245 = vmatprep.mubr.bf16.mxu0 0
    %1246 = vmatmul.mubr.bf16.gmra.mrb[0].mxu0 %v1211
    %v1247 = vpop.f32.mrb[0].mxu0
    %v1248 = vadd.f32 0.0, %v1247
    %v1249 = vpop.f32.mrb[0].mxu0
    %v1250 = vadd.f32 0.0, %v1249
    %v1251 = vpop.f32.mrb[0].mxu0
    %v1252 = vpop.f32.mrb[0].mxu0
    %1253 = vdwg.mxu0
    %1254 = vmatprep.subr.bf16.mxu0 %v387
    %1255 = vmatpush1.bf16.msra.mxu0 %v386
    %1256 = vmatprep.subr.bf16.mxu0 %v391
    %1257 = vmatpush1.bf16.msra.mxu0 %v390
    %1258 = vmatprep.subr.bf16.mxu0 %v395
    %1259 = vmatpush1.bf16.msra.mxu0 %v394
    %1260 = vmatprep.subr.bf16.mxu0 %v399
    %1261 = vmatpush1.bf16.msra.mxu0 %v398
    %1262 = vmatprep.subr.bf16.mxu0 %v403
    %1263 = vmatpush1.bf16.msra.mxu0 %v402
    %1264 = vmatprep.subr.bf16.mxu0 %v407
    %1265 = vmatpush1.bf16.msra.mxu0 %v406
    %1266 = vmatprep.subr.bf16.mxu0 %v411
    %1267 = vmatpush1.bf16.msra.mxu0 %v410
    %1268 = vmatprep.subr.bf16.mxu0 %v415
    %1269 = vmatpush1.bf16.msra.mxu0 %v414
    %1270 = vmatprep.subr.bf16.mxu0 0
    %1271 = vmatpush1.bf16.msra.mxu0 0
    %1272 = vmatprep.subr.bf16.mxu0 0
    %1273 = vmatpush1.bf16.msra.mxu0 0
    %1274 = vmatprep.subr.bf16.mxu0 0
    %1275 = vmatpush1.bf16.msra.mxu0 0
    %1276 = vmatprep.subr.bf16.mxu0 0
    %1277 = vmatpush1.bf16.msra.mxu0 0
    %1278 = vmatprep.subr.bf16.mxu0 0
    %1279 = vmatpush1.bf16.msra.mxu0 0
    %1280 = vmatprep.subr.bf16.mxu0 0
    %1281 = vmatpush1.bf16.msra.mxu0 0
    %1282 = vmatprep.subr.bf16.mxu0 0
    %1283 = vmatpush1.bf16.msra.mxu0 0
    %1284 = vmatprep.subr.bf16.mxu0 0
    %1285 = vmatpush1.bf16.msra.mxu0 0
    %1286 = vmatprep.mubr.bf16.mxu0 0
    %1287 = vmatmul.mubr.bf16.gmra.mrb[0].mxu0 %v1211
    %v1288 = vpop.f32.mrb[0].mxu0
    %v1289 = vadd.f32 0.0, %v1288
    %v1290 = vpop.f32.mrb[0].mxu0
    %v1291 = vadd.f32 0.0, %v1290
    %v1292 = vpop.f32.mrb[0].mxu0
    %v1293 = vpop.f32.mrb[0].mxu0
    %1294 = vdwg.mxu0
    %v1299 = vrot.slane %v1248, 4
    %v1300 = vrot.slane %v1250, 4
    %v1301 = vrot.slane %v1289, 4
    %v1302 = vrot.slane %v1291, 4
    %v1307 = vadd.f32 %v1205, %v1299
    %v1308 = vadd.f32 %v1206, %v1300
    %v1309 = vadd.f32 %v1207, %v1301
    %v1310 = vadd.f32 %v1208, %v1302
    %v1311 = vxor.u32 %v1307, 2147483648
    %v1312 = vmul.f32 %v1311, 1.442695
    %v1313 = vpow.pop %v1312
    %v1314 = vadd.f32 %v1313, 1.0
    %v1315 = vrcp.pop %v1314
    %v1316 = vmul.f32 1.0, %v1315
    %v1317 = vxor.u32 %v1308, 2147483648
    %v1318 = vmul.f32 %v1317, 1.442695
    %v1319 = vpow.pop %v1318
    %v1320 = vadd.f32 %v1319, 1.0
    %v1321 = vrcp.pop %v1320
    %v1322 = vmul.f32 1.0, %v1321
    %v1323 = vtanh.pop %v1309
    %v1324 = vxor.u32 %v1310, 2147483648
    %v1325 = vmul.f32 %v1324, 1.442695
    %v1326 = vpow.pop %v1325
    %v1327 = vadd.f32 %v1326, 1.0
    %v1328 = vrcp.pop %v1327
    %v1329 = vmul.f32 1.0, %v1328
    %v1331 = vrot.slane %v1202, 6
    %v1333 = vmul.f32 %v1322, %v1331
    %v1334 = vmul.f32 %v1316, %v1323
    %v1335 = vadd.f32 %v1333, %v1334
    %v1336 = vtanh.pop %v1335
    %v1337 = vmul.f32 %v1329, %v1336
    %v1338 = vld [vmem:[#allocation2 + $0x20] sm:$0xc0]
    %v1339 = vld [vmem:[#allocation2 + $0x28] sm:$0xc0]
    %v1340 = vld [vmem:[#allocation2 + $0x30] sm:$0xc0]
    %v1341 = vld [vmem:[#allocation2 + $0x38] sm:$0xc0]
    %v1342 = vpack.c.bf16 %v1337, %v1337
    %v1344 = vrot.slane %v1342, 2
    %1346 = vmatprep.subr.bf16.mxu0 %v385
    %1347 = vmatpush1.bf16.msra.mxu0 %v384
    %1348 = vmatprep.subr.bf16.mxu0 %v389
    %1349 = vmatpush1.bf16.msra.mxu0 %v388
    %1350 = vmatprep.subr.bf16.mxu0 %v393
    %1351 = vmatpush1.bf16.msra.mxu0 %v392
    %1352 = vmatprep.subr.bf16.mxu0 %v397
    %1353 = vmatpush1.bf16.msra.mxu0 %v396
    %1354 = vmatprep.subr.bf16.mxu0 %v401
    %1355 = vmatpush1.bf16.msra.mxu0 %v400
    %1356 = vmatprep.subr.bf16.mxu0 %v405
    %1357 = vmatpush1.bf16.msra.mxu0 %v404
    %1358 = vmatprep.subr.bf16.mxu0 %v409
    %1359 = vmatpush1.bf16.msra.mxu0 %v408
    %1360 = vmatprep.subr.bf16.mxu0 %v413
    %1361 = vmatpush1.bf16.msra.mxu0 %v412
    %1362 = vmatprep.subr.bf16.mxu0 0
    %1363 = vmatpush1.bf16.msra.mxu0 0
    %1364 = vmatprep.subr.bf16.mxu0 0
    %1365 = vmatpush1.bf16.msra.mxu0 0
    %1366 = vmatprep.subr.bf16.mxu0 0
    %1367 = vmatpush1.bf16.msra.mxu0 0
    %1368 = vmatprep.subr.bf16.mxu0 0
    %1369 = vmatpush1.bf16.msra.mxu0 0
    %1370 = vmatprep.subr.bf16.mxu0 0
    %1371 = vmatpush1.bf16.msra.mxu0 0
    %1372 = vmatprep.subr.bf16.mxu0 0
    %1373 = vmatpush1.bf16.msra.mxu0 0
    %1374 = vmatprep.subr.bf16.mxu0 0
    %1375 = vmatpush1.bf16.msra.mxu0 0
    %1376 = vmatprep.subr.bf16.mxu0 0
    %1377 = vmatpush1.bf16.msra.mxu0 0
    %1378 = vmatprep.mubr.bf16.mxu0 0
    %1379 = vmatmul.mubr.bf16.gmra.mrb[0].mxu0 %v1344
    %v1380 = vpop.f32.mrb[0].mxu0
    %v1381 = vadd.f32 0.0, %v1380
    %v1382 = vpop.f32.mrb[0].mxu0
    %v1383 = vadd.f32 0.0, %v1382
    %v1384 = vpop.f32.mrb[0].mxu0
    %v1385 = vpop.f32.mrb[0].mxu0
    %1386 = vdwg.mxu0
    %1387 = vmatprep.subr.bf16.mxu0 %v387
    %1388 = vmatpush1.bf16.msra.mxu0 %v386
    %1389 = vmatprep.subr.bf16.mxu0 %v391
    %1390 = vmatpush1.bf16.msra.mxu0 %v390
    %1391 = vmatprep.subr.bf16.mxu0 %v395
    %1392 = vmatpush1.bf16.msra.mxu0 %v394
    %1393 = vmatprep.subr.bf16.mxu0 %v399
    %1394 = vmatpush1.bf16.msra.mxu0 %v398
    %1395 = vmatprep.subr.bf16.mxu0 %v403
    %1396 = vmatpush1.bf16.msra.mxu0 %v402
    %1397 = vmatprep.subr.bf16.mxu0 %v407
    %1398 = vmatpush1.bf16.msra.mxu0 %v406
    %1399 = vmatprep.subr.bf16.mxu0 %v411
    %1400 = vmatpush1.bf16.msra.mxu0 %v410
    %1401 = vmatprep.subr.bf16.mxu0 %v415
    %1402 = vmatpush1.bf16.msra.mxu0 %v414
    %1403 = vmatprep.subr.bf16.mxu0 0
    %1404 = vmatpush1.bf16.msra.mxu0 0
    %1405 = vmatprep.subr.bf16.mxu0 0
    %1406 = vmatpush1.bf16.msra.mxu0 0
    %1407 = vmatprep.subr.bf16.mxu0 0
    %1408 = vmatpush1.bf16.msra.mxu0 0
    %1409 = vmatprep.subr.bf16.mxu0 0
    %1410 = vmatpush1.bf16.msra.mxu0 0
    %1411 = vmatprep.subr.bf16.mxu0 0
    %1412 = vmatpush1.bf16.msra.mxu0 0
    %1413 = vmatprep.subr.bf16.mxu0 0
    %1414 = vmatpush1.bf16.msra.mxu0 0
    %1415 = vmatprep.subr.bf16.mxu0 0
    %1416 = vmatpush1.bf16.msra.mxu0 0
    %1417 = vmatprep.subr.bf16.mxu0 0
    %1418 = vmatpush1.bf16.msra.mxu0 0
    %1419 = vmatprep.mubr.bf16.mxu0 0
    %1420 = vmatmul.mubr.bf16.gmra.mrb[0].mxu0 %v1344
    %v1421 = vpop.f32.mrb[0].mxu0
    %v1422 = vadd.f32 0.0, %v1421
    %v1423 = vpop.f32.mrb[0].mxu0
    %v1424 = vadd.f32 0.0, %v1423
    %v1425 = vpop.f32.mrb[0].mxu0
    %v1426 = vpop.f32.mrb[0].mxu0
    %1427 = vdwg.mxu0
    %v1432 = vrot.slane %v1381, 2
    %v1433 = vrot.slane %v1383, 2
    %v1434 = vrot.slane %v1422, 2
    %v1435 = vrot.slane %v1424, 2
    %v1440 = vadd.f32 %v1338, %v1432
    %v1441 = vadd.f32 %v1339, %v1433
    %v1442 = vadd.f32 %v1340, %v1434
    %v1443 = vadd.f32 %v1341, %v1435
    %v1444 = vxor.u32 %v1440, 2147483648
    %v1445 = vmul.f32 %v1444, 1.442695
    %v1446 = vpow.pop %v1445
    %v1447 = vadd.f32 %v1446, 1.0
    %v1448 = vrcp.pop %v1447
    %v1449 = vmul.f32 1.0, %v1448
    %v1450 = vxor.u32 %v1441, 2147483648
    %v1451 = vmul.f32 %v1450, 1.442695
    %v1452 = vpow.pop %v1451
    %v1453 = vadd.f32 %v1452, 1.0
    %v1454 = vrcp.pop %v1453
    %v1455 = vmul.f32 1.0, %v1454
    %v1456 = vtanh.pop %v1442
    %v1457 = vxor.u32 %v1443, 2147483648
    %v1458 = vmul.f32 %v1457, 1.442695
    %v1459 = vpow.pop %v1458
    %v1460 = vadd.f32 %v1459, 1.0
    %v1461 = vrcp.pop %v1460
    %v1462 = vmul.f32 1.0, %v1461
    %v1464 = vrot.slane %v1335, 6
    %v1466 = vmul.f32 %v1455, %v1464
    %v1467 = vmul.f32 %v1449, %v1456
    %v1468 = vadd.f32 %v1466, %v1467
    %v1469 = vtanh.pop %v1468
    %v1470 = vmul.f32 %v1462, %v1469
    %1471 = vst [vmem:[#allocation5 - $0x6] sm:$0xc0] %v1470
    %1472 = vst [vmem:[#allocation7 - $0x6] sm:$0xc0] %v1468
    %v1473 = vpack.c.bf16 %v1470, %v1470
    %v1474 = vld [vmem:[%s4] sm:$0xff]
    %v1475 = vld [vmem:[%s4 + $0x8] sm:$0xff]
    %v1476 = vld [vmem:[%s4 + $0x10] sm:$0xff]
    %v1477 = vld [vmem:[%s4 + $0x18] sm:$0xff]
    %v1478 = vld [vmem:[%s4 + $0x20] sm:$0xff]
    %v1479 = vld [vmem:[%s4 + $0x28] sm:$0xff]
    %v1480 = vld [vmem:[%s4 + $0x30] sm:$0xff]
    %v1481 = vld [vmem:[%s4 + $0x38] sm:$0xff]
    %v1482 = vld [vmem:[%s4 + $0x40] sm:$0xff]
    %v1483 = vld [vmem:[%s4 + $0x48] sm:$0xff]
    %v1484 = vld [vmem:[%s4 + $0x50] sm:$0xff]
    %v1485 = vld [vmem:[%s4 + $0x58] sm:$0xff]
    %v1486 = vld [vmem:[%s4 + $0x60] sm:$0xff]
    %v1487 = vld [vmem:[%s4 + $0x68] sm:$0xff]
    %v1488 = vld [vmem:[%s4 + $0x70] sm:$0xff]
    %v1489 = vld [vmem:[%s4 + $0x78] sm:$0xff]
    %v1490 = vld [vmem:[%s5] sm:$0x3]
    %v1492 = vlaneseq
    %v1493 = vshrl.u32 %v1492, 7
    %v1494 = vsub.s32 0, %v1493
    %v1495 = vrot.slane %v1490, %v1494
    %v1496 = vlaneseq
    %v1497 = vshrl.u32 %v1496, 7
    %v1498 = vsub.s32 1, %v1497
    %v1499 = vrot.slane %v1490, %v1498
    %v1503 = vrot.slane %v1473, 3
    %v1521 = vunpack.c.l.b16 %v1474
    %v1522 = vunpack.c.h.b16 %v1474
    %v1523 = vunpack.c.l.b16 %v1475
    %v1524 = vunpack.c.h.b16 %v1475
    %v1525 = vunpack.c.l.b16 %v1476
    %v1526 = vunpack.c.h.b16 %v1476
    %v1527 = vunpack.c.l.b16 %v1477
    %v1528 = vunpack.c.h.b16 %v1477
    %v1529 = vunpack.c.l.b16 %v1478
    %v1530 = vunpack.c.h.b16 %v1478
    %v1531 = vunpack.c.l.b16 %v1479
    %v1532 = vunpack.c.h.b16 %v1479
    %v1533 = vunpack.c.l.b16 %v1480
    %v1534 = vunpack.c.h.b16 %v1480
    %v1535 = vunpack.c.l.b16 %v1481
    %v1536 = vunpack.c.h.b16 %v1481
    %v1537 = vunpack.c.l.b16 %v1482
    %v1538 = vunpack.c.h.b16 %v1482
    %v1539 = vunpack.c.l.b16 %v1483
    %v1540 = vunpack.c.h.b16 %v1483
    %v1541 = vunpack.c.l.b16 %v1484
    %v1542 = vunpack.c.h.b16 %v1484
    %v1543 = vunpack.c.l.b16 %v1485
    %v1544 = vunpack.c.h.b16 %v1485
    %v1545 = vunpack.c.l.b16 %v1486
    %v1546 = vunpack.c.h.b16 %v1486
    %v1547 = vunpack.c.l.b16 %v1487
    %v1548 = vunpack.c.h.b16 %v1487
    %v1549 = vunpack.c.l.b16 %v1488
    %v1550 = vunpack.c.h.b16 %v1488
    %v1551 = vunpack.c.l.b16 %v1489
    %v1552 = vunpack.c.h.b16 %v1489
    %v1553 = vpack.c.b16 %v1523, %v1521
    %v1554 = vpack.c.b16 %v1524, %v1522
    %v1555 = vpack.c.b16 %v1527, %v1525
    %v1556 = vpack.c.b16 %v1528, %v1526
    %v1557 = vpack.c.b16 %v1531, %v1529
    %v1558 = vpack.c.b16 %v1532, %v1530
    %v1559 = vpack.c.b16 %v1535, %v1533
    %v1560 = vpack.c.b16 %v1536, %v1534
    %v1561 = vpack.c.b16 %v1539, %v1537
    %v1562 = vpack.c.b16 %v1540, %v1538
    %v1563 = vpack.c.b16 %v1543, %v1541
    %v1564 = vpack.c.b16 %v1544, %v1542
    %v1565 = vpack.c.b16 %v1547, %v1545
    %v1566 = vpack.c.b16 %v1548, %v1546
    %v1567 = vpack.c.b16 %v1551, %v1549
    %v1568 = vpack.c.b16 %v1552, %v1550
    %1585 = vmatprep.subr.bf16.mxu0 %v1554
    %1586 = vmatpush1.bf16.msra.mxu0 %v1553
    %1587 = vmatprep.subr.bf16.mxu0 %v1556
    %1588 = vmatpush1.bf16.msra.mxu0 %v1555
    %1589 = vmatprep.subr.bf16.mxu0 %v1558
    %1590 = vmatpush1.bf16.msra.mxu0 %v1557
    %1591 = vmatprep.subr.bf16.mxu0 %v1560
    %1592 = vmatpush1.bf16.msra.mxu0 %v1559
    %1593 = vmatprep.subr.bf16.mxu0 %v1562
    %1594 = vmatpush1.bf16.msra.mxu0 %v1561
    %1595 = vmatprep.subr.bf16.mxu0 %v1564
    %1596 = vmatpush1.bf16.msra.mxu0 %v1563
    %1597 = vmatprep.subr.bf16.mxu0 %v1566
    %1598 = vmatpush1.bf16.msra.mxu0 %v1565
    %1599 = vmatprep.subr.bf16.mxu0 %v1568
    %1600 = vmatpush1.bf16.msra.mxu0 %v1567
    %1601 = vmatprep.subr.bf16.mxu0 0
    %1602 = vmatpush1.bf16.msra.mxu0 0
    %1603 = vmatprep.subr.bf16.mxu0 0
    %1604 = vmatpush1.bf16.msra.mxu0 0
    %1605 = vmatprep.subr.bf16.mxu0 0
    %1606 = vmatpush1.bf16.msra.mxu0 0
    %1607 = vmatprep.subr.bf16.mxu0 0
    %1608 = vmatpush1.bf16.msra.mxu0 0
    %1609 = vmatprep.subr.bf16.mxu0 0
    %1610 = vmatpush1.bf16.msra.mxu0 0
    %1611 = vmatprep.subr.bf16.mxu0 0
    %1612 = vmatpush1.bf16.msra.mxu0 0
    %1613 = vmatprep.subr.bf16.mxu0 0
    %1614 = vmatpush1.bf16.msra.mxu0 0
    %1615 = vmatprep.subr.bf16.mxu0 0
    %1616 = vmatpush1.bf16.msra.mxu0 0
    %1617 = vmatprep.mubr.bf16.mxu0 0
    %1618 = vmatmul.mubr.bf16.gmra.mrb[0].mxu0 %v1503
    %v1619 = vpop.f32.mrb[0].mxu0
    %v1620 = vadd.f32 %v1495, %v1619
    %v1621 = vpop.f32.mrb[0].mxu0
    %v1622 = vadd.f32 %v1499, %v1621
    %v1623 = vpop.f32.mrb[0].mxu0
    %v1624 = vpop.f32.mrb[0].mxu0
    %1625 = vdwg.mxu0
    %v1628 = vcombine.low %v1620, %v1622
    %v1630 = vunpack.c.l.s4 1983009808
    %v1631 = vunpack.c.0.s8 %v1630
    %v1632 = vlaneseq
    %v1633 = vshrl.u32 %v1632, 7
    %v1634 = vsub.s32 %v1631, %v1633
    %v1635 = vrot.slane %v1628, %v1634
    %1637 = vst [vmem:[#allocation3] sm:$0xf] %v1635
    // Predicated region
    $region26: #{lstm_model_forward.1} parent=1 // pred_check
      _
    $region27: #{lstm_model_forward.1} parent=1 // pred_check_branch
      %1639 = sbr.rel (0) target = $region29
    $region28: #{lstm_model_forward.1} parent=1 // pred_region
      %s1641 = ssub.s32 64, 64
      %1642 = vsyncadd [#allocation4], %s1641
      %s1644 = sshll.u32 [#allocation3], 4
      %s1645 = int_to_ptr.vmem [resolvable:$true] %s1644
      %1647 = dma.vmem_to_hbm [thread:$0]  %s1645, 64, %s6, [#allocation4]
    $region29: #{lstm_model_forward.1} parent=1 // pred_fallthru
      _
    // Predicated region
    $region30: #{lstm_model_forward.1} parent=1 // pred_check
      _
    $region31: #{lstm_model_forward.1} parent=1 // pred_check_branch
      %1649 = sbr.rel (0) target = $region33
    $region32: #{lstm_model_forward.1} parent=1 // pred_region
      %s1651 = ssub.s32 32, 32
      %1652 = vsyncadd [#allocation6], %s1651
      %s1654 = sshll.u32 [#allocation5], 4
      %s1655 = int_to_ptr.vmem [resolvable:$true] %s1654
      %1657 = dma.vmem_to_hbm [thread:$0]  %s1655, 32, %s7, [#allocation6]
    $region33: #{lstm_model_forward.1} parent=1 // pred_fallthru
      _
    // Predicated region
    $region34: #{lstm_model_forward.1} parent=1 // pred_check
      _
    $region35: #{lstm_model_forward.1} parent=1 // pred_check_branch
      %1659 = sbr.rel (0) target = $region37
    $region36: #{lstm_model_forward.1} parent=1 // pred_region
      %s1661 = ssub.s32 32, 32
      %1662 = vsyncadd [#allocation6], %s1661
      %s1664 = sshll.u32 [#allocation7], 4
      %s1665 = int_to_ptr.vmem [resolvable:$true] %s1664
      %1667 = dma.vmem_to_hbm [thread:$0]  %s1665, 32, %s8, [#allocation6]
    $region37: #{lstm_model_forward.1} parent=1 // pred_fallthru
      _
    // Predicated region
    $region38: #{lstm_model_forward.1} parent=1 // pred_check
      _
    $region39: #{lstm_model_forward.1} parent=1 // pred_check_branch
      %1669 = sbr.rel (0) target = $region41
    $region40: #{lstm_model_forward.1} parent=1 // pred_region
      %1670 = dma.done [#allocation4], 64
    $region41: #{lstm_model_forward.1} parent=1 // pred_fallthru
      _
    // Predicated region
    $region42: #{lstm_model_forward.1} parent=1 // pred_check
      _
    $region43: #{lstm_model_forward.1} parent=1 // pred_check_branch
      %1672 = sbr.rel (0) target = $region45
    $region44: #{lstm_model_forward.1} parent=1 // pred_region
      %1673 = dma.done [#allocation6], 32
    $region45: #{lstm_model_forward.1} parent=1 // pred_fallthru
      _
    // Predicated region
    $region46: #{lstm_model_forward.1} parent=1 // pred_check
      _
    $region47: #{lstm_model_forward.1} parent=1 // pred_check_branch
      %1675 = sbr.rel (0) target = $region49
    $region48: #{lstm_model_forward.1} parent=1 // pred_region
      %1676 = dma.done [#allocation6], 32
    $region49: #{lstm_model_forward.1} parent=1 // pred_fallthru
      _
    %1677 = vsyncpa [#allocation4], 1
    %1678 = vsyncpa [#allocation6], 1

</llo_original>
